<compile_context>
chip_gen: v6e
topology: v6e:2x2x1
jax: 0.10.0
libtpu: 0.0.40
codegen_flags: <defaults>
</compile_context>

<pallas_src>
import numpy as np
import jax
import jax.numpy as jnp
from jax.experimental import pallas as pl
from jax.experimental.pallas import tpu as pltpu

MXU_DTYPE = jnp.bfloat16     # matmul operand dtype (f32 accumulate)
EPS = 1e-5                   # PyTorch InstanceNorm2d default
LANE = 128                   # TPU lane width


def _rup(x, m):
    return ((x + m - 1) // m) * m


# ----------------------------- kernel factory --------------------------------

def _make_kernel(layer_meta, Bt, hf, wf, c_last):
    n_layers = len(layer_meta)

    def kernel(*refs):
        x_ref, lab_ref, encw_ref, encb_ref, w1bt_ref = refs[:5]
        m_refs = refs[5:5 + n_layers]
        bd_ref, w2f_ref, b2_ref, o_ref = refs[5 + n_layers:5 + n_layers + 4]
        scr_refs = refs[5 + n_layers + 4:]
        f32 = jnp.float32

        # Encoder Linear + ReLU and the hoisted per-sample label term of the
        # head's 1x1 conv (computed once per sample, not per spatial position).
        lab = lab_ref[0].astype(MXU_DTYPE)                                # (Bt, Lp)
        enc = jnp.maximum(
            jnp.dot(lab, encw_ref[...], preferred_element_type=f32)
            + encb_ref[...], 0.0)                                         # (Bt, Ep)
        lab_bias = jnp.dot(enc.astype(MXU_DTYPE), w1bt_ref[...],
                           preferred_element_type=f32)                    # (Bt, >=c_last)

        # Downsampler: [conv(k4,s2,p1,no bias) + InstanceNorm2d + ReLU] per layer.
        src = x_ref                                                       # 2D f32 ref
        feats = None
        for li, meta in enumerate(layer_meta):
            h_out, w_out, c_out = meta["h_out"], meta["w_out"], meta["c_out"]
            kin, kout, off = meta["kin"], meta["kout"], meta["off"]
            src_rp = meta["src_rp"]
            is_last = li == n_layers - 1

            # stride-2 row gather for all 4 kh offsets & all samples: plain
            # strided VMEM reads (no MXU, no HIGHEST), fused along K and M.
            rows_b = []
            for b in range(Bt):
                base = b * src_rp
                parts = [src[pl.ds(base + kh, h_out, 2), :] for kh in range(4)]
                rows_b.append(jnp.concatenate(parts, axis=1))             # (h_out, 4*kin)
            lhs = rows_b[0] if Bt == 1 else jnp.concatenate(rows_b, axis=0)
            # ONE fused conv matmul per layer (bf16 operands, f32 accumulate).
            acc = jnp.dot(lhs.astype(MXU_DTYPE), m_refs[li][...],
                          preferred_element_type=f32)                     # (Bt*h_out, kout)
            asq = acc * acc

            if not is_last:
                nxt = scr_refs[li]
                dst_rp = meta["dst_rp"]
                nxt[...] = jnp.zeros_like(nxt)   # zero conv-pad / alignment rows

            n_sp = float(h_out * w_out)
            ys = []
            for b in range(Bt):
                a_b = acc[b * h_out:(b + 1) * h_out, :]
                q_b = asq[b * h_out:(b + 1) * h_out, :]
                # one-pass InstanceNorm stats: per-channel sum & sum of squares
                rsum = jnp.sum(a_b, axis=0, keepdims=True)                # (1, kout)
                rsq = jnp.sum(q_b, axis=0, keepdims=True)
                csum = rsum[:, off:off + c_out]
                csq = rsq[:, off:off + c_out]
                for wo in range(1, w_out):
                    lo = off + wo * c_out
                    csum = csum + rsum[:, lo:lo + c_out]
                    csq = csq + rsq[:, lo:lo + c_out]
                mean = csum / n_sp
                var = jnp.maximum(csq / n_sp - mean * mean, 0.0)          # clamped
                inv = jax.lax.rsqrt(var + EPS)
                shift = -mean * inv
                # channel-minor broadcast of scale/shift on the VPU (lane concats);
                # conv-pad / lane-alignment columns get zero shift -> stay exactly 0.
                n_groups = w_out + (2 if off else 0)
                tail = kout - n_groups * c_out
                zc = jnp.zeros_like(shift)
                sc_parts = [inv] * n_groups
                sh_parts = ([zc] + [shift] * w_out + [zc]) if off else [shift] * w_out
                if tail:
                    zt = jnp.zeros((1, tail), f32)
                    sc_parts = sc_parts + [zt]
                    sh_parts = sh_parts + [zt]
                scale_f = jnp.concatenate(sc_parts, axis=1)               # (1, kout)
                shift_f = jnp.concatenate(sh_parts, axis=1)
                y_b = jnp.maximum(a_b * scale_f + shift_f, 0.0)           # (h_out, kout)
                if is_last:
                    ys.append(y_b)
                else:
                    r0 = b * dst_rp + 1
                    nxt[r0:r0 + h_out, :] = y_b
            if is_last:
                feats = ys
            else:
                src = scr_refs[li]

        # Head: 1x1 conv over [features ; broadcast(label encoding)] + ReLU,
        # then the full-map 4x4 conv + bias + sigmoid (reduction on VPU/XLU).
        kf = layer_meta[-1]["kout"]
        fe = feats[0] if Bt == 1 else jnp.concatenate(feats, axis=0)      # (Bt*hf, kf)
        y1 = jnp.dot(fe.astype(MXU_DTYPE), bd_ref[...],
                     preferred_element_type=f32)                          # (Bt*hf, kf)
        w2f = w2f_ref[...]                                                # (hf, kf) f32
        ltail = kf - wf * c_last
        logits = []
        for b in range(Bt):
            lab_c = lab_bias[b:b + 1, :c_last]                            # (1, c_last)
            lparts = [lab_c] * wf
            if ltail:
                lparts = lparts + [jnp.zeros((1, ltail), f32)]
            lflat = jnp.concatenate(lparts, axis=1)                       # (1, kf)
            y1_b = jnp.maximum(y1[b * hf:(b + 1) * hf, :] + lflat, 0.0)
            v = y1_b * w2f
            s = jnp.sum(jnp.sum(v, axis=1, keepdims=True), axis=0, keepdims=True)
            logits.append(s)                                              # (1, 1)
        logit_row = logits[0] if Bt == 1 else jnp.concatenate(logits, axis=1)
        o_ref[0] = jax.nn.sigmoid(logit_row + b2_ref[...])                # (1, Bt)

    return kernel


# ------------------------ host-side weight restructuring ----------------------

def _conv_layer_consts(w_oikk, h_in, w_in, pad_out):
    """Restructure a (Cout, Cin, 4, 4) stride-2 pad-1 conv weight for the flat
    channel-last row layout: one (4*kin, kout) matrix that folds the kw offsets,
    stride-2 column gather, conv weights and the output layout's zero-pad /
    lane-alignment columns.  kh offsets are stacked along K (matching the
    in-kernel lane-concat of the 4 gathered row slabs)."""
    w_np = np.asarray(w_oikk, np.float32)
    c_out, c_in = w_np.shape[0], w_np.shape[1]
    h_out, w_out = h_in // 2, w_in // 2
    kin = _rup((w_in + 2) * c_in, LANE)
    off = c_out if pad_out else 0
    wflat_out = (w_out + 2) * c_out if pad_out else w_out * c_out
    kout = _rup(wflat_out, LANE)

    m = np.zeros((4, kin, kout), np.float32)
    for kh in range(4):
        for wo in range(w_out):
            for kw in range(4):
                wp = 2 * wo + kw              # padded input width group
                m[kh, wp * c_in:(wp + 1) * c_in,
                  off + wo * c_out:off + (wo + 1) * c_out] = w_np[:, :, kh, kw].T
    m_stack = jnp.asarray(m.reshape(4 * kin, kout)).astype(MXU_DTYPE)
    meta = dict(h_in=h_in, w_in=w_in, c_in=c_in, h_out=h_out, w_out=w_out,
                c_out=c_out, kin=kin, kout=kout, off=off)
    return m_stack, meta


def make_discriminator(params, H, W, batch_block=8):
    """Build a jitted forward(image, label) running the whole Discriminator
    forward as one fused Pallas kernel; `batch_block` samples per grid step."""
    Bt = int(batch_block)
    assert Bt >= 1

    enc_w = np.asarray(params["enc_w"], np.float32)
    enc_b = np.asarray(params["enc_b"], np.float32).reshape(1, -1)
    L, E = enc_w.shape
    L_pad, E_pad = _rup(L, LANE), _rup(E, LANE)
    enc_w_p = np.zeros((L_pad, E_pad), np.float32); enc_w_p[:L, :E] = enc_w
    enc_b_p = np.zeros((1, E_pad), np.float32); enc_b_p[:, :E] = enc_b

    layer_meta, m_stacks = [], []
    h_in, w_in, c_in = H, W, 3
    n_layers = len(params["down_ws"])
    for li, wconv in enumerate(params["down_ws"]):
        pad_out = li + 1 < n_layers
        m_stack, meta = _conv_layer_consts(wconv, h_in, w_in, pad_out)
        m_stacks.append(m_stack)
        layer_meta.append(meta)
        h_in, w_in, c_in = meta["h_out"], meta["w_out"], meta["c_out"]
    hf, wf, c_last = h_in, w_in, c_in
    assert (hf, wf) == (4, 4), (
        "output head requires the final feature map to be exactly 4x4 "
        f"(got {hf}x{wf}); pick H, W, d_layers accordingly")
    # TODO(synk): generalize the head to final maps larger than 4x4 (the original
    # PyTorch module's view(B, 1) also only works for an exactly-4x4 final map).

    # per-sample row pitch (multiple of 8 sublanes) of each activation buffer
    rp0 = _rup(H + 2, 8)
    layer_meta[0]["src_rp"] = rp0
    for li in range(n_layers - 1):
        dst_rp = _rup(layer_meta[li]["h_out"] + 2, 8)
        layer_meta[li]["dst_rp"] = dst_rp
        layer_meta[li + 1]["src_rp"] = dst_rp
    kin0 = layer_meta[0]["kin"]
    kf = layer_meta[-1]["kout"]

    # head weights restructured for the flat channel-last layout
    w1 = np.asarray(params["out_w1"], np.float32).reshape(c_last, c_last + E)
    w1bt = np.zeros((E_pad, _rup(c_last, LANE)), np.float32)
    w1bt[:E, :c_last] = w1[:, c_last:].T
    bd = np.zeros((kf, kf), np.float32)
    w1a_t = w1[:, :c_last].T
    for wo in range(wf):
        bd[wo * c_last:(wo + 1) * c_last, wo * c_last:(wo + 1) * c_last] = w1a_t
    w2f = np.zeros((hf, kf), np.float32)
    w2f[:, :wf * c_last] = (np.transpose(np.asarray(params["out_w2"], np.float32)[0],
                                         (1, 2, 0)).reshape(hf, wf * c_last))
    b2 = np.asarray(params["out_b2"], np.float32).reshape(1, 1)

    consts = ([jnp.asarray(enc_w_p).astype(MXU_DTYPE),
               jnp.asarray(enc_b_p),
               jnp.asarray(w1bt).astype(MXU_DTYPE)]
              + m_stacks
              + [jnp.asarray(bd).astype(MXU_DTYPE),
                 jnp.asarray(w2f),
                 jnp.asarray(b2)])

    kernel = _make_kernel(tuple(layer_meta), Bt, hf, wf, c_last)

    def const_spec(a):
        nd = a.ndim
        return pl.BlockSpec(a.shape, lambda i, _n=nd: (0,) * _n)

    in_specs = ([pl.BlockSpec((Bt * rp0, kin0), lambda i: (i, 0)),
                 pl.BlockSpec((1, Bt, L_pad), lambda i: (i, 0, 0))]
                + [const_spec(a) for a in consts])
    out_spec = pl.BlockSpec((1, 1, Bt), lambda i: (i, 0, 0))
    scratch_shapes = [
        pltpu.VMEM((Bt * layer_meta[li]["dst_rp"], layer_meta[li]["kout"]),
                   jnp.float32)
        for li in range(n_layers - 1)]

    @jax.jit
    def forward(image, label):
        B = image.shape[0]
        B_pad = _rup(B, Bt)
        nblk = B_pad // Bt
        # NCHW -> channel-last flat rows: zero conv-pad rows/cols inserted once,
        # rows padded to a multiple of 8 per sample, lanes padded to 128.
        x = jnp.transpose(image, (0, 2, 3, 1))                       # (B, H, W, 3)
        x = jnp.pad(x, ((0, B_pad - B), (1, rp0 - H - 1), (1, 1), (0, 0)))
        x = x.reshape(B_pad, rp0, (W + 2) * 3)
        x = jnp.pad(x, ((0, 0), (0, 0), (0, kin0 - (W + 2) * 3)))
        x2d = x.reshape(B_pad * rp0, kin0)
        lab = jnp.pad(label.astype(jnp.float32),
                      ((0, B_pad - B), (0, L_pad - L))).reshape(nblk, Bt, L_pad)
        out = pl.pallas_call(
            kernel,
            out_shape=jax.ShapeDtypeStruct((nblk, 1, Bt), jnp.float32),
            grid_spec=pltpu.PrefetchScalarGridSpec(
                num_scalar_prefetch=0,
                grid=(nblk,),
                in_specs=in_specs,
                out_specs=out_spec,
                scratch_shapes=scratch_shapes),
            compiler_params=pltpu.CompilerParams(
                dimension_semantics=("parallel",)),
        )(x2d, lab, *consts)
        return out.reshape(B_pad, 1)[:B]

    return forward


# --------------------------- params / pure-JAX reference ----------------------

def init_params(key, cfg):
    E, L, d = cfg["encoding_dim"], cfg["label_dim"], cfg["d_dim"]
    keys = jax.random.split(key, 6 + cfg["d_layers"])
    p = {}
    p["enc_w"] = 0.1 * jax.random.normal(keys[0], (L, E), jnp.float32)
    p["enc_b"] = 0.1 * jax.random.normal(keys[1], (1, E), jnp.float32)
    down_ws, cin, cout, ki = [], 3, d, 2
    down_ws.append(0.1 * jax.random.normal(keys[ki], (cout, cin, 4, 4), jnp.float32)); ki += 1
    for _ in range(cfg["d_layers"]):
        cin, cout = cout, cout * 2
        down_ws.append(0.1 * jax.random.normal(keys[ki], (cout, cin, 4, 4), jnp.float32)); ki += 1
    p["down_ws"] = down_ws
    C = cout
    p["out_w1"] = 0.1 * jax.random.normal(keys[ki], (C, C + E, 1, 1), jnp.float32); ki += 1
    p["out_w2"] = 0.1 * jax.random.normal(keys[ki], (1, C, 4, 4), jnp.float32); ki += 1
    p["out_b2"] = jnp.asarray(0.05, jnp.float32)
    return p


def im2col_nchw(x, k, s, p):
    B, C, H, W = x.shape
    Ho = (H + 2 * p - k) // s + 1
    Wo = (W + 2 * p - k) // s + 1
    xp = jnp.pad(x, ((0, 0), (0, 0), (p, p), (p, p)))
    cols = []
    for kh in range(k):
        for kw in range(k):
            cols.append(xp[:, :, kh:kh + s * Ho:s, kw:kw + s * Wo:s])
    pat = jnp.stack(cols, axis=2).reshape(B, C * k * k, Ho * Wo)
    return jnp.transpose(pat, (0, 2, 1)), Ho, Wo


def reference_forward(params, image, label):
    """Pure-JAX float32 (HIGHEST precision) ground-truth reference."""
    f32 = jnp.float32
    HI = jax.lax.Precision.HIGHEST
    enc = jnp.maximum(
        jnp.dot(label, params["enc_w"], precision=HI,
                preferred_element_type=f32) + params["enc_b"], 0.0)
    net, feats = image, None
    for wconv in params["down_ws"]:
        c_out = wconv.shape[0]
        pat, Ho, Wo = im2col_nchw(net, 4, 2, 1)
        wmat = wconv.reshape(c_out, -1).T
        y = jnp.einsum("bpk,ko->bpo", pat, wmat, precision=HI,
                       preferred_element_type=f32)
        mean = jnp.mean(y, axis=1, keepdims=True)
        var = jnp.mean((y - mean) ** 2, axis=1, keepdims=True)
        feats = jnp.maximum((y - mean) * jax.lax.rsqrt(var + EPS), 0.0)
        net = jnp.transpose(feats, (0, 2, 1)).reshape(net.shape[0], c_out, Ho, Wo)
    B, P, C = feats.shape
    E = enc.shape[1]
    w1 = params["out_w1"].reshape(C, C + E)
    y1 = jnp.maximum(
        jnp.einsum("bpc,cd->bpd", feats, w1[:, :C].T, precision=HI,
                   preferred_element_type=f32)
        + jnp.einsum("be,ed->bd", enc, w1[:, C:].T, precision=HI,
                     preferred_element_type=f32)[:, None, :], 0.0)
    w2p = jnp.transpose(params["out_w2"][0], (1, 2, 0)).reshape(P, C)
    logit = jnp.sum(y1 * w2p[None], axis=(1, 2)) + params["out_b2"]
    return jax.nn.sigmoid(logit)[:, None]


# ------------------------------------ main ------------------------------------

if __name__ == "__main__":
    cfg = dict(d_dim=8, label_dim=6, encoding_dim=8, d_layers=1)
    key = jax.random.PRNGKey(0)
    kp, ki, kl = jax.random.split(key, 3)
    params = init_params(kp, cfg)
    B, H, W = 4, 16, 16
    image = jax.random.normal(ki, (B, 3, H, W), jnp.float32)   # NCHW, like PyTorch
    label = jax.random.normal(kl, (B, cfg["label_dim"]), jnp.float32)

    # 2 samples per grid step -> grid=(2,): even number of steps for v7x's two
    # TensorCores, and every conv matmul runs with M = 2*h_out rows.
    forward = make_discriminator(params, H, W, batch_block=2)
    out = jax.block_until_ready(forward(image, label))

    ref = reference_forward(params, image, label)
    assert out.shape == (B, 1), out.shape
    assert bool(jnp.all(jnp.isfinite(out)))
    # kernel uses bf16 MXU operands (f32 accumulate); reference is full f32.
    assert jnp.allclose(out, ref, rtol=1e-2, atol=1e-2), (out, ref)
    print("KERNEL_OK")
</pallas_src>

<mosaic_0001>
module attributes {stable_mosaic.version = 11 : i64} {
  func.func @kernel(%arg0: i32, %arg1: memref<48x128xf32, #tpu.memory_space<vmem>>, %arg2: memref<1x2x128xf32, #tpu.memory_space<vmem>>, %arg3: memref<128x128xbf16, #tpu.memory_space<vmem>>, %arg4: memref<1x128xf32, #tpu.memory_space<vmem>>, %arg5: memref<128x128xbf16, #tpu.memory_space<vmem>>, %arg6: memref<512x128xbf16, #tpu.memory_space<vmem>>, %arg7: memref<512x128xbf16, #tpu.memory_space<vmem>>, %arg8: memref<128x128xbf16, #tpu.memory_space<vmem>>, %arg9: memref<4x128xf32, #tpu.memory_space<vmem>>, %arg10: memref<1x1xf32, #tpu.memory_space<vmem>>, %arg11: memref<1x1x2xf32, #tpu.memory_space<vmem>>, %arg12: memref<32x128xf32, #tpu.memory_space<vmem>>) attributes {dimension_semantics = [#tpu.dimension_semantics<parallel>], iteration_bounds = array<i64: 2>, scalar_prefetch = 0 : i64, scratch_operands = 1 : i64, tpu.core_type = #tpu.core_type<tc>, window_params = [{transform_indices = @transform_0, window_bounds = array<i64: 48, 128>}, {transform_indices = @transform_1, window_bounds = array<i64: 1, 2, 128>}, {pipeline_mode = #tpu.pipeline_mode<synchronous>, transform_indices = @transform_2, window_bounds = array<i64: 128, 128>}, {pipeline_mode = #tpu.pipeline_mode<synchronous>, transform_indices = @transform_3, window_bounds = array<i64: 1, 128>}, {pipeline_mode = #tpu.pipeline_mode<synchronous>, transform_indices = @transform_4, window_bounds = array<i64: 128, 128>}, {pipeline_mode = #tpu.pipeline_mode<synchronous>, transform_indices = @transform_5, window_bounds = array<i64: 512, 128>}, {pipeline_mode = #tpu.pipeline_mode<synchronous>, transform_indices = @transform_6, window_bounds = array<i64: 512, 128>}, {pipeline_mode = #tpu.pipeline_mode<synchronous>, transform_indices = @transform_7, window_bounds = array<i64: 128, 128>}, {pipeline_mode = #tpu.pipeline_mode<synchronous>, transform_indices = @transform_8, window_bounds = array<i64: 4, 128>}, {pipeline_mode = #tpu.pipeline_mode<synchronous>, transform_indices = @transform_9, window_bounds = array<i64: 1, 1>}, {transform_indices = @transform_10, window_bounds = array<i64: 1, 1, 2>}]} {
    %c0 = arith.constant 0 : index
    %c0_0 = arith.constant 0 : index
    %c0_1 = arith.constant 0 : index
    %0 = vector.load %arg2[%c0, %c0_0, %c0_1] : memref<1x2x128xf32, #tpu.memory_space<vmem>>, vector<1x2x128xf32>
    %1 = vector.shape_cast %0 : vector<1x2x128xf32> to vector<2x128xf32>
    %2 = arith.truncf %1 : vector<2x128xf32> to vector<2x128xbf16>
    %c0_2 = arith.constant 0 : index
    %c0_3 = arith.constant 0 : index
    %3 = vector.load %arg3[%c0_2, %c0_3] : memref<128x128xbf16, #tpu.memory_space<vmem>>, vector<128x128xbf16>
    %cst = arith.constant dense<0.000000e+00> : vector<2x128xf32>
    %4 = tpu.matmul %2, %3, %cst {dimension_numbers = #tpu.dot_dimension_numbers<[1], [0], [0], [1], [0, 0, 1, 1], [], []>} : vector<2x128xbf16>, vector<128x128xbf16>, vector<2x128xf32> -> vector<2x128xf32>
    %c0_4 = arith.constant 0 : index
    %c0_5 = arith.constant 0 : index
    %5 = vector.load %arg4[%c0_4, %c0_5] : memref<1x128xf32, #tpu.memory_space<vmem>>, vector<1x128xf32>
    %6 = vector.broadcast %5 : vector<1x128xf32> to vector<2x128xf32>
    %7 = arith.addf %4, %6 : vector<2x128xf32>
    %cst_6 = arith.constant 0.000000e+00 : f32
    %8 = vector.broadcast %cst_6 : f32 to vector<2x128xf32>
    %9 = arith.maximumf %7, %8 : vector<2x128xf32>
    %10 = arith.truncf %9 : vector<2x128xf32> to vector<2x128xbf16>
    %c0_7 = arith.constant 0 : index
    %c0_8 = arith.constant 0 : index
    %11 = vector.load %arg5[%c0_7, %c0_8] : memref<128x128xbf16, #tpu.memory_space<vmem>>, vector<128x128xbf16>
    %cst_9 = arith.constant dense<0.000000e+00> : vector<2x128xf32>
    %12 = tpu.matmul %10, %11, %cst_9 {dimension_numbers = #tpu.dot_dimension_numbers<[1], [0], [0], [1], [0, 0, 1, 1], [], []>} : vector<2x128xbf16>, vector<128x128xbf16>, vector<2x128xf32> -> vector<2x128xf32>
    %c0_10 = arith.constant 0 : index
    %c0_11 = arith.constant 0 : index
    %13 = tpu.strided_load %arg1[%c0_10, %c0_11] {strides = array<i32: 2, 1>} : memref<48x128xf32, #tpu.memory_space<vmem>>, vector<8x128xf32>
    %c1 = arith.constant 1 : index
    %c0_12 = arith.constant 0 : index
    %14 = tpu.strided_load %arg1[%c1, %c0_12] {strides = array<i32: 2, 1>} : memref<48x128xf32, #tpu.memory_space<vmem>>, vector<8x128xf32>
    %c2 = arith.constant 2 : index
    %c0_13 = arith.constant 0 : index
    %15 = tpu.strided_load %arg1[%c2, %c0_13] {strides = array<i32: 2, 1>} : memref<48x128xf32, #tpu.memory_space<vmem>>, vector<8x128xf32>
    %c3 = arith.constant 3 : index
    %c0_14 = arith.constant 0 : index
    %16 = tpu.strided_load %arg1[%c3, %c0_14] {strides = array<i32: 2, 1>} : memref<48x128xf32, #tpu.memory_space<vmem>>, vector<8x128xf32>
    %17 = tpu.concatenate %13, %14, %15, %16 in 1 : vector<8x128xf32>, vector<8x128xf32>, vector<8x128xf32>, vector<8x128xf32> -> vector<8x512xf32>
    %c24 = arith.constant 24 : index
    %c0_15 = arith.constant 0 : index
    %18 = tpu.strided_load %arg1[%c24, %c0_15] {strides = array<i32: 2, 1>} : memref<48x128xf32, #tpu.memory_space<vmem>>, vector<8x128xf32>
    %c25 = arith.constant 25 : index
    %c0_16 = arith.constant 0 : index
    %19 = tpu.strided_load %arg1[%c25, %c0_16] {strides = array<i32: 2, 1>} : memref<48x128xf32, #tpu.memory_space<vmem>>, vector<8x128xf32>
    %c26 = arith.constant 26 : index
    %c0_17 = arith.constant 0 : index
    %20 = tpu.strided_load %arg1[%c26, %c0_17] {strides = array<i32: 2, 1>} : memref<48x128xf32, #tpu.memory_space<vmem>>, vector<8x128xf32>
    %c27 = arith.constant 27 : index
    %c0_18 = arith.constant 0 : index
    %21 = tpu.strided_load %arg1[%c27, %c0_18] {strides = array<i32: 2, 1>} : memref<48x128xf32, #tpu.memory_space<vmem>>, vector<8x128xf32>
    %22 = tpu.concatenate %18, %19, %20, %21 in 1 : vector<8x128xf32>, vector<8x128xf32>, vector<8x128xf32>, vector<8x128xf32> -> vector<8x512xf32>
    %23 = tpu.concatenate %17, %22 in 0 : vector<8x512xf32>, vector<8x512xf32> -> vector<16x512xf32>
    %24 = arith.truncf %23 : vector<16x512xf32> to vector<16x512xbf16>
    %c0_19 = arith.constant 0 : index
    %c0_20 = arith.constant 0 : index
    %25 = vector.load %arg6[%c0_19, %c0_20] : memref<512x128xbf16, #tpu.memory_space<vmem>>, vector<512x128xbf16>
    %cst_21 = arith.constant dense<0.000000e+00> : vector<16x128xf32>
    %26 = tpu.matmul %24, %25, %cst_21 {dimension_numbers = #tpu.dot_dimension_numbers<[1], [0], [0], [1], [0, 0, 1, 1], [], []>} : vector<16x512xbf16>, vector<512x128xbf16>, vector<16x128xf32> -> vector<16x128xf32>
    %27 = arith.mulf %26, %26 : vector<16x128xf32>
    %cst_22 = arith.constant 0.000000e+00 : f32
    %28 = vector.broadcast %cst_22 : f32 to vector<32x128xf32>
    %c0_23 = arith.constant 0 : index
    %c0_24 = arith.constant 0 : index
    %29 = vector.load %arg12[%c0_23, %c0_24] : memref<32x128xf32, #tpu.memory_space<vmem>>, vector<32x128xf32>
    tpu.vector_store %arg12[%c0_23, %c0_24], %28 {strides = array<i32>} : memref<32x128xf32, #tpu.memory_space<vmem>>, vector<32x128xf32>,
    %30 = vector.extract_strided_slice %26 {offsets = [0, 0], sizes = [8, 128], strides = [1, 1]} : vector<16x128xf32> to vector<8x128xf32>
    %31 = vector.extract_strided_slice %27 {offsets = [0, 0], sizes = [8, 128], strides = [1, 1]} : vector<16x128xf32> to vector<8x128xf32>
    %cst_25 = arith.constant dense<0.000000e+00> : vector<128xf32>
    %32 = vector.multi_reduction <add>, %30, %cst_25 [0] : vector<8x128xf32> to vector<128xf32>
    %33 = vector.shape_cast %32 : vector<128xf32> to vector<1x128xf32>
    %cst_26 = arith.constant dense<0.000000e+00> : vector<128xf32>
    %34 = vector.multi_reduction <add>, %31, %cst_26 [0] : vector<8x128xf32> to vector<128xf32>
    %35 = vector.shape_cast %34 : vector<128xf32> to vector<1x128xf32>
    %36 = vector.extract_strided_slice %33 {offsets = [0, 8], sizes = [1, 8], strides = [1, 1]} : vector<1x128xf32> to vector<1x8xf32>
    %37 = vector.extract_strided_slice %35 {offsets = [0, 8], sizes = [1, 8], strides = [1, 1]} : vector<1x128xf32> to vector<1x8xf32>
    %38 = vector.extract_strided_slice %33 {offsets = [0, 16], sizes = [1, 8], strides = [1, 1]} : vector<1x128xf32> to vector<1x8xf32>
    %39 = arith.addf %36, %38 : vector<1x8xf32>
    %40 = vector.extract_strided_slice %35 {offsets = [0, 16], sizes = [1, 8], strides = [1, 1]} : vector<1x128xf32> to vector<1x8xf32>
    %41 = arith.addf %37, %40 : vector<1x8xf32>
    %42 = vector.extract_strided_slice %33 {offsets = [0, 24], sizes = [1, 8], strides = [1, 1]} : vector<1x128xf32> to vector<1x8xf32>
    %43 = arith.addf %39, %42 : vector<1x8xf32>
    %44 = vector.extract_strided_slice %35 {offsets = [0, 24], sizes = [1, 8], strides = [1, 1]} : vector<1x128xf32> to vector<1x8xf32>
    %45 = arith.addf %41, %44 : vector<1x8xf32>
    %46 = vector.extract_strided_slice %33 {offsets = [0, 32], sizes = [1, 8], strides = [1, 1]} : vector<1x128xf32> to vector<1x8xf32>
    %47 = arith.addf %43, %46 : vector<1x8xf32>
    %48 = vector.extract_strided_slice %35 {offsets = [0, 32], sizes = [1, 8], strides = [1, 1]} : vector<1x128xf32> to vector<1x8xf32>
    %49 = arith.addf %45, %48 : vector<1x8xf32>
    %50 = vector.extract_strided_slice %33 {offsets = [0, 40], sizes = [1, 8], strides = [1, 1]} : vector<1x128xf32> to vector<1x8xf32>
    %51 = arith.addf %47, %50 : vector<1x8xf32>
    %52 = vector.extract_strided_slice %35 {offsets = [0, 40], sizes = [1, 8], strides = [1, 1]} : vector<1x128xf32> to vector<1x8xf32>
    %53 = arith.addf %49, %52 : vector<1x8xf32>
    %54 = vector.extract_strided_slice %33 {offsets = [0, 48], sizes = [1, 8], strides = [1, 1]} : vector<1x128xf32> to vector<1x8xf32>
    %55 = arith.addf %51, %54 : vector<1x8xf32>
    %56 = vector.extract_strided_slice %35 {offsets = [0, 48], sizes = [1, 8], strides = [1, 1]} : vector<1x128xf32> to vector<1x8xf32>
    %57 = arith.addf %53, %56 : vector<1x8xf32>
    %58 = vector.extract_strided_slice %33 {offsets = [0, 56], sizes = [1, 8], strides = [1, 1]} : vector<1x128xf32> to vector<1x8xf32>
    %59 = arith.addf %55, %58 : vector<1x8xf32>
    %60 = vector.extract_strided_slice %35 {offsets = [0, 56], sizes = [1, 8], strides = [1, 1]} : vector<1x128xf32> to vector<1x8xf32>
    %61 = arith.addf %57, %60 : vector<1x8xf32>
    %62 = vector.extract_strided_slice %33 {offsets = [0, 64], sizes = [1, 8], strides = [1, 1]} : vector<1x128xf32> to vector<1x8xf32>
    %63 = arith.addf %59, %62 : vector<1x8xf32>
    %64 = vector.extract_strided_slice %35 {offsets = [0, 64], sizes = [1, 8], strides = [1, 1]} : vector<1x128xf32> to vector<1x8xf32>
    %65 = arith.addf %61, %64 : vector<1x8xf32>
    %cst_27 = arith.constant 6.400000e+01 : f32
    %66 = vector.broadcast %cst_27 : f32 to vector<1x8xf32>
    %67 = arith.divf %63, %66 : vector<1x8xf32>
    %cst_28 = arith.constant 6.400000e+01 : f32
    %68 = vector.broadcast %cst_28 : f32 to vector<1x8xf32>
    %69 = arith.divf %65, %68 : vector<1x8xf32>
    %70 = arith.mulf %67, %67 : vector<1x8xf32>
    %71 = arith.subf %69, %70 : vector<1x8xf32>
    %cst_29 = arith.constant 0.000000e+00 : f32
    %72 = vector.broadcast %cst_29 : f32 to vector<1x8xf32>
    %73 = arith.maximumf %71, %72 : vector<1x8xf32>
    %cst_30 = arith.constant 9.99999974E-6 : f32
    %74 = vector.broadcast %cst_30 : f32 to vector<1x8xf32>
    %75 = arith.addf %73, %74 : vector<1x8xf32>
    %76 = math.rsqrt %75 : vector<1x8xf32>
    %cst_31 = arith.constant 0.000000e+00 : f32
    %77 = vector.broadcast %cst_31 : f32 to vector<1x8xf32>
    %78 = arith.subf %77, %67 : vector<1x8xf32>
    %79 = arith.mulf %78, %76 : vector<1x8xf32>
    %cst_32 = arith.constant 0.000000e+00 : f32
    %80 = vector.broadcast %cst_32 : f32 to vector<1x8xf32>
    %cst_33 = arith.constant 0.000000e+00 : f32
    %81 = vector.broadcast %cst_33 : f32 to vector<1x48xf32>
    %82 = tpu.concatenate %76, %76, %76, %76, %76, %76, %76, %76, %76, %76, %81 in 1 : vector<1x8xf32>, vector<1x8xf32>, vector<1x8xf32>, vector<1x8xf32>, vector<1x8xf32>, vector<1x8xf32>, vector<1x8xf32>, vector<1x8xf32>, vector<1x8xf32>, vector<1x8xf32>, vector<1x48xf32> -> vector<1x128xf32>
    %83 = tpu.concatenate %80, %79, %79, %79, %79, %79, %79, %79, %79, %80, %81 in 1 : vector<1x8xf32>, vector<1x8xf32>, vector<1x8xf32>, vector<1x8xf32>, vector<1x8xf32>, vector<1x8xf32>, vector<1x8xf32>, vector<1x8xf32>, vector<1x8xf32>, vector<1x8xf32>, vector<1x48xf32> -> vector<1x128xf32>
    %84 = vector.broadcast %82 : vector<1x128xf32> to vector<8x128xf32>
    %85 = arith.mulf %30, %84 : vector<8x128xf32>
    %86 = vector.broadcast %83 : vector<1x128xf32> to vector<8x128xf32>
    %87 = arith.addf %85, %86 : vector<8x128xf32>
    %cst_34 = arith.constant 0.000000e+00 : f32
    %88 = vector.broadcast %cst_34 : f32 to vector<8x128xf32>
    %89 = arith.maximumf %87, %88 : vector<8x128xf32>
    %c1_35 = arith.constant 1 : index
    %c0_36 = arith.constant 0 : index
    %90 = vector.load %arg12[%c1_35, %c0_36] : memref<32x128xf32, #tpu.memory_space<vmem>>, vector<8x128xf32>
    tpu.vector_store %arg12[%c1_35, %c0_36], %89 {strides = array<i32>} : memref<32x128xf32, #tpu.memory_space<vmem>>, vector<8x128xf32>,
    %91 = vector.extract_strided_slice %26 {offsets = [8, 0], sizes = [8, 128], strides = [1, 1]} : vector<16x128xf32> to vector<8x128xf32>
    %92 = vector.extract_strided_slice %27 {offsets = [8, 0], sizes = [8, 128], strides = [1, 1]} : vector<16x128xf32> to vector<8x128xf32>
    %cst_37 = arith.constant dense<0.000000e+00> : vector<128xf32>
    %93 = vector.multi_reduction <add>, %91, %cst_37 [0] : vector<8x128xf32> to vector<128xf32>
    %94 = vector.shape_cast %93 : vector<128xf32> to vector<1x128xf32>
    %cst_38 = arith.constant dense<0.000000e+00> : vector<128xf32>
    %95 = vector.multi_reduction <add>, %92, %cst_38 [0] : vector<8x128xf32> to vector<128xf32>
    %96 = vector.shape_cast %95 : vector<128xf32> to vector<1x128xf32>
    %97 = vector.extract_strided_slice %94 {offsets = [0, 8], sizes = [1, 8], strides = [1, 1]} : vector<1x128xf32> to vector<1x8xf32>
    %98 = vector.extract_strided_slice %96 {offsets = [0, 8], sizes = [1, 8], strides = [1, 1]} : vector<1x128xf32> to vector<1x8xf32>
    %99 = vector.extract_strided_slice %94 {offsets = [0, 16], sizes = [1, 8], strides = [1, 1]} : vector<1x128xf32> to vector<1x8xf32>
    %100 = arith.addf %97, %99 : vector<1x8xf32>
    %101 = vector.extract_strided_slice %96 {offsets = [0, 16], sizes = [1, 8], strides = [1, 1]} : vector<1x128xf32> to vector<1x8xf32>
    %102 = arith.addf %98, %101 : vector<1x8xf32>
    %103 = vector.extract_strided_slice %94 {offsets = [0, 24], sizes = [1, 8], strides = [1, 1]} : vector<1x128xf32> to vector<1x8xf32>
    %104 = arith.addf %100, %103 : vector<1x8xf32>
    %105 = vector.extract_strided_slice %96 {offsets = [0, 24], sizes = [1, 8], strides = [1, 1]} : vector<1x128xf32> to vector<1x8xf32>
    %106 = arith.addf %102, %105 : vector<1x8xf32>
    %107 = vector.extract_strided_slice %94 {offsets = [0, 32], sizes = [1, 8], strides = [1, 1]} : vector<1x128xf32> to vector<1x8xf32>
    %108 = arith.addf %104, %107 : vector<1x8xf32>
    %109 = vector.extract_strided_slice %96 {offsets = [0, 32], sizes = [1, 8], strides = [1, 1]} : vector<1x128xf32> to vector<1x8xf32>
    %110 = arith.addf %106, %109 : vector<1x8xf32>
    %111 = vector.extract_strided_slice %94 {offsets = [0, 40], sizes = [1, 8], strides = [1, 1]} : vector<1x128xf32> to vector<1x8xf32>
    %112 = arith.addf %108, %111 : vector<1x8xf32>
    %113 = vector.extract_strided_slice %96 {offsets = [0, 40], sizes = [1, 8], strides = [1, 1]} : vector<1x128xf32> to vector<1x8xf32>
    %114 = arith.addf %110, %113 : vector<1x8xf32>
    %115 = vector.extract_strided_slice %94 {offsets = [0, 48], sizes = [1, 8], strides = [1, 1]} : vector<1x128xf32> to vector<1x8xf32>
    %116 = arith.addf %112, %115 : vector<1x8xf32>
    %117 = vector.extract_strided_slice %96 {offsets = [0, 48], sizes = [1, 8], strides = [1, 1]} : vector<1x128xf32> to vector<1x8xf32>
    %118 = arith.addf %114, %117 : vector<1x8xf32>
    %119 = vector.extract_strided_slice %94 {offsets = [0, 56], sizes = [1, 8], strides = [1, 1]} : vector<1x128xf32> to vector<1x8xf32>
    %120 = arith.addf %116, %119 : vector<1x8xf32>
    %121 = vector.extract_strided_slice %96 {offsets = [0, 56], sizes = [1, 8], strides = [1, 1]} : vector<1x128xf32> to vector<1x8xf32>
    %122 = arith.addf %118, %121 : vector<1x8xf32>
    %123 = vector.extract_strided_slice %94 {offsets = [0, 64], sizes = [1, 8], strides = [1, 1]} : vector<1x128xf32> to vector<1x8xf32>
    %124 = arith.addf %120, %123 : vector<1x8xf32>
    %125 = vector.extract_strided_slice %96 {offsets = [0, 64], sizes = [1, 8], strides = [1, 1]} : vector<1x128xf32> to vector<1x8xf32>
    %126 = arith.addf %122, %125 : vector<1x8xf32>
    %cst_39 = arith.constant 6.400000e+01 : f32
    %127 = vector.broadcast %cst_39 : f32 to vector<1x8xf32>
    %128 = arith.divf %124, %127 : vector<1x8xf32>
    %cst_40 = arith.constant 6.400000e+01 : f32
    %129 = vector.broadcast %cst_40 : f32 to vector<1x8xf32>
    %130 = arith.divf %126, %129 : vector<1x8xf32>
    %131 = arith.mulf %128, %128 : vector<1x8xf32>
    %132 = arith.subf %130, %131 : vector<1x8xf32>
    %cst_41 = arith.constant 0.000000e+00 : f32
    %133 = vector.broadcast %cst_41 : f32 to vector<1x8xf32>
    %134 = arith.maximumf %132, %133 : vector<1x8xf32>
    %cst_42 = arith.constant 9.99999974E-6 : f32
    %135 = vector.broadcast %cst_42 : f32 to vector<1x8xf32>
    %136 = arith.addf %134, %135 : vector<1x8xf32>
    %137 = math.rsqrt %136 : vector<1x8xf32>
    %cst_43 = arith.constant 0.000000e+00 : f32
    %138 = vector.broadcast %cst_43 : f32 to vector<1x8xf32>
    %139 = arith.subf %138, %128 : vector<1x8xf32>
    %140 = arith.mulf %139, %137 : vector<1x8xf32>
    %cst_44 = arith.constant 0.000000e+00 : f32
    %141 = vector.broadcast %cst_44 : f32 to vector<1x8xf32>
    %cst_45 = arith.constant 0.000000e+00 : f32
    %142 = vector.broadcast %cst_45 : f32 to vector<1x48xf32>
    %143 = tpu.concatenate %137, %137, %137, %137, %137, %137, %137, %137, %137, %137, %142 in 1 : vector<1x8xf32>, vector<1x8xf32>, vector<1x8xf32>, vector<1x8xf32>, vector<1x8xf32>, vector<1x8xf32>, vector<1x8xf32>, vector<1x8xf32>, vector<1x8xf32>, vector<1x8xf32>, vector<1x48xf32> -> vector<1x128xf32>
    %144 = tpu.concatenate %141, %140, %140, %140, %140, %140, %140, %140, %140, %141, %142 in 1 : vector<1x8xf32>, vector<1x8xf32>, vector<1x8xf32>, vector<1x8xf32>, vector<1x8xf32>, vector<1x8xf32>, vector<1x8xf32>, vector<1x8xf32>, vector<1x8xf32>, vector<1x8xf32>, vector<1x48xf32> -> vector<1x128xf32>
    %145 = vector.broadcast %143 : vector<1x128xf32> to vector<8x128xf32>
    %146 = arith.mulf %91, %145 : vector<8x128xf32>
    %147 = vector.broadcast %144 : vector<1x128xf32> to vector<8x128xf32>
    %148 = arith.addf %146, %147 : vector<8x128xf32>
    %cst_46 = arith.constant 0.000000e+00 : f32
    %149 = vector.broadcast %cst_46 : f32 to vector<8x128xf32>
    %150 = arith.maximumf %148, %149 : vector<8x128xf32>
    %c17 = arith.constant 17 : index
    %c0_47 = arith.constant 0 : index
    %151 = vector.load %arg12[%c17, %c0_47] : memref<32x128xf32, #tpu.memory_space<vmem>>, vector<8x128xf32>
    tpu.vector_store %arg12[%c17, %c0_47], %150 {strides = array<i32>} : memref<32x128xf32, #tpu.memory_space<vmem>>, vector<8x128xf32>,
    %c0_48 = arith.constant 0 : index
    %c0_49 = arith.constant 0 : index
    %152 = tpu.strided_load %arg12[%c0_48, %c0_49] {strides = array<i32: 2, 1>} : memref<32x128xf32, #tpu.memory_space<vmem>>, vector<4x128xf32>
    %c1_50 = arith.constant 1 : index
    %c0_51 = arith.constant 0 : index
    %153 = tpu.strided_load %arg12[%c1_50, %c0_51] {strides = array<i32: 2, 1>} : memref<32x128xf32, #tpu.memory_space<vmem>>, vector<4x128xf32>
    %c2_52 = arith.constant 2 : index
    %c0_53 = arith.constant 0 : index
    %154 = tpu.strided_load %arg12[%c2_52, %c0_53] {strides = array<i32: 2, 1>} : memref<32x128xf32, #tpu.memory_space<vmem>>, vector<4x128xf32>
    %c3_54 = arith.constant 3 : index
    %c0_55 = arith.constant 0 : index
    %155 = tpu.strided_load %arg12[%c3_54, %c0_55] {strides = array<i32: 2, 1>} : memref<32x128xf32, #tpu.memory_space<vmem>>, vector<4x128xf32>
    %156 = tpu.concatenate %152, %153, %154, %155 in 1 : vector<4x128xf32>, vector<4x128xf32>, vector<4x128xf32>, vector<4x128xf32> -> vector<4x512xf32>
    %c16 = arith.constant 16 : index
    %c0_56 = arith.constant 0 : index
    %157 = tpu.strided_load %arg12[%c16, %c0_56] {strides = array<i32: 2, 1>} : memref<32x128xf32, #tpu.memory_space<vmem>>, vector<4x128xf32>
    %c17_57 = arith.constant 17 : index
    %c0_58 = arith.constant 0 : index
    %158 = tpu.strided_load %arg12[%c17_57, %c0_58] {strides = array<i32: 2, 1>} : memref<32x128xf32, #tpu.memory_space<vmem>>, vector<4x128xf32>
    %c18 = arith.constant 18 : index
    %c0_59 = arith.constant 0 : index
    %159 = tpu.strided_load %arg12[%c18, %c0_59] {strides = array<i32: 2, 1>} : memref<32x128xf32, #tpu.memory_space<vmem>>, vector<4x128xf32>
    %c19 = arith.constant 19 : index
    %c0_60 = arith.constant 0 : index
    %160 = tpu.strided_load %arg12[%c19, %c0_60] {strides = array<i32: 2, 1>} : memref<32x128xf32, #tpu.memory_space<vmem>>, vector<4x128xf32>
    %161 = tpu.concatenate %157, %158, %159, %160 in 1 : vector<4x128xf32>, vector<4x128xf32>, vector<4x128xf32>, vector<4x128xf32> -> vector<4x512xf32>
    %162 = tpu.concatenate %156, %161 in 0 : vector<4x512xf32>, vector<4x512xf32> -> vector<8x512xf32>
    %163 = arith.truncf %162 : vector<8x512xf32> to vector<8x512xbf16>
    %c0_61 = arith.constant 0 : index
    %c0_62 = arith.constant 0 : index
    %164 = vector.load %arg7[%c0_61, %c0_62] : memref<512x128xbf16, #tpu.memory_space<vmem>>, vector<512x128xbf16>
    %cst_63 = arith.constant dense<0.000000e+00> : vector<8x128xf32>
    %165 = tpu.matmul %163, %164, %cst_63 {dimension_numbers = #tpu.dot_dimension_numbers<[1], [0], [0], [1], [0, 0, 1, 1], [], []>} : vector<8x512xbf16>, vector<512x128xbf16>, vector<8x128xf32> -> vector<8x128xf32>
    %166 = arith.mulf %165, %165 : vector<8x128xf32>
    %167 = vector.extract_strided_slice %165 {offsets = [0, 0], sizes = [4, 128], strides = [1, 1]} : vector<8x128xf32> to vector<4x128xf32>
    %168 = vector.extract_strided_slice %166 {offsets = [0, 0], sizes = [4, 128], strides = [1, 1]} : vector<8x128xf32> to vector<4x128xf32>
    %cst_64 = arith.constant dense<0.000000e+00> : vector<128xf32>
    %169 = vector.multi_reduction <add>, %167, %cst_64 [0] : vector<4x128xf32> to vector<128xf32>
    %170 = vector.shape_cast %169 : vector<128xf32> to vector<1x128xf32>
    %cst_65 = arith.constant dense<0.000000e+00> : vector<128xf32>
    %171 = vector.multi_reduction <add>, %168, %cst_65 [0] : vector<4x128xf32> to vector<128xf32>
    %172 = vector.shape_cast %171 : vector<128xf32> to vector<1x128xf32>
    %173 = vector.extract_strided_slice %170 {offsets = [0, 0], sizes = [1, 16], strides = [1, 1]} : vector<1x128xf32> to vector<1x16xf32>
    %174 = vector.extract_strided_slice %172 {offsets = [0, 0], sizes = [1, 16], strides = [1, 1]} : vector<1x128xf32> to vector<1x16xf32>
    %175 = vector.extract_strided_slice %170 {offsets = [0, 16], sizes = [1, 16], strides = [1, 1]} : vector<1x128xf32> to vector<1x16xf32>
    %176 = arith.addf %173, %175 : vector<1x16xf32>
    %177 = vector.extract_strided_slice %172 {offsets = [0, 16], sizes = [1, 16], strides = [1, 1]} : vector<1x128xf32> to vector<1x16xf32>
    %178 = arith.addf %174, %177 : vector<1x16xf32>
    %179 = vector.extract_strided_slice %170 {offsets = [0, 32], sizes = [1, 16], strides = [1, 1]} : vector<1x128xf32> to vector<1x16xf32>
    %180 = arith.addf %176, %179 : vector<1x16xf32>
    %181 = vector.extract_strided_slice %172 {offsets = [0, 32], sizes = [1, 16], strides = [1, 1]} : vector<1x128xf32> to vector<1x16xf32>
    %182 = arith.addf %178, %181 : vector<1x16xf32>
    %183 = vector.extract_strided_slice %170 {offsets = [0, 48], sizes = [1, 16], strides = [1, 1]} : vector<1x128xf32> to vector<1x16xf32>
    %184 = arith.addf %180, %183 : vector<1x16xf32>
    %185 = vector.extract_strided_slice %172 {offsets = [0, 48], sizes = [1, 16], strides = [1, 1]} : vector<1x128xf32> to vector<1x16xf32>
    %186 = arith.addf %182, %185 : vector<1x16xf32>
    %cst_66 = arith.constant 1.600000e+01 : f32
    %187 = vector.broadcast %cst_66 : f32 to vector<1x16xf32>
    %188 = arith.divf %184, %187 : vector<1x16xf32>
    %cst_67 = arith.constant 1.600000e+01 : f32
    %189 = vector.broadcast %cst_67 : f32 to vector<1x16xf32>
    %190 = arith.divf %186, %189 : vector<1x16xf32>
    %191 = arith.mulf %188, %188 : vector<1x16xf32>
    %192 = arith.subf %190, %191 : vector<1x16xf32>
    %cst_68 = arith.constant 0.000000e+00 : f32
    %193 = vector.broadcast %cst_68 : f32 to vector<1x16xf32>
    %194 = arith.maximumf %192, %193 : vector<1x16xf32>
    %cst_69 = arith.constant 9.99999974E-6 : f32
    %195 = vector.broadcast %cst_69 : f32 to vector<1x16xf32>
    %196 = arith.addf %194, %195 : vector<1x16xf32>
    %197 = math.rsqrt %196 : vector<1x16xf32>
    %cst_70 = arith.constant 0.000000e+00 : f32
    %198 = vector.broadcast %cst_70 : f32 to vector<1x16xf32>
    %199 = arith.subf %198, %188 : vector<1x16xf32>
    %200 = arith.mulf %199, %197 : vector<1x16xf32>
    %cst_71 = arith.constant 0.000000e+00 : f32
    %201 = vector.broadcast %cst_71 : f32 to vector<1x64xf32>
    %202 = tpu.concatenate %197, %197, %197, %197, %201 in 1 : vector<1x16xf32>, vector<1x16xf32>, vector<1x16xf32>, vector<1x16xf32>, vector<1x64xf32> -> vector<1x128xf32>
    %203 = tpu.concatenate %200, %200, %200, %200, %201 in 1 : vector<1x16xf32>, vector<1x16xf32>, vector<1x16xf32>, vector<1x16xf32>, vector<1x64xf32> -> vector<1x128xf32>
    %204 = vector.broadcast %202 : vector<1x128xf32> to vector<4x128xf32>
    %205 = arith.mulf %167, %204 : vector<4x128xf32>
    %206 = vector.broadcast %203 : vector<1x128xf32> to vector<4x128xf32>
    %207 = arith.addf %205, %206 : vector<4x128xf32>
    %cst_72 = arith.constant 0.000000e+00 : f32
    %208 = vector.broadcast %cst_72 : f32 to vector<4x128xf32>
    %209 = arith.maximumf %207, %208 : vector<4x128xf32>
    %210 = vector.extract_strided_slice %165 {offsets = [4, 0], sizes = [4, 128], strides = [1, 1]} : vector<8x128xf32> to vector<4x128xf32>
    %211 = vector.extract_strided_slice %166 {offsets = [4, 0], sizes = [4, 128], strides = [1, 1]} : vector<8x128xf32> to vector<4x128xf32>
    %cst_73 = arith.constant dense<0.000000e+00> : vector<128xf32>
    %212 = vector.multi_reduction <add>, %210, %cst_73 [0] : vector<4x128xf32> to vector<128xf32>
    %213 = vector.shape_cast %212 : vector<128xf32> to vector<1x128xf32>
    %cst_74 = arith.constant dense<0.000000e+00> : vector<128xf32>
    %214 = vector.multi_reduction <add>, %211, %cst_74 [0] : vector<4x128xf32> to vector<128xf32>
    %215 = vector.shape_cast %214 : vector<128xf32> to vector<1x128xf32>
    %216 = vector.extract_strided_slice %213 {offsets = [0, 0], sizes = [1, 16], strides = [1, 1]} : vector<1x128xf32> to vector<1x16xf32>
    %217 = vector.extract_strided_slice %215 {offsets = [0, 0], sizes = [1, 16], strides = [1, 1]} : vector<1x128xf32> to vector<1x16xf32>
    %218 = vector.extract_strided_slice %213 {offsets = [0, 16], sizes = [1, 16], strides = [1, 1]} : vector<1x128xf32> to vector<1x16xf32>
    %219 = arith.addf %216, %218 : vector<1x16xf32>
    %220 = vector.extract_strided_slice %215 {offsets = [0, 16], sizes = [1, 16], strides = [1, 1]} : vector<1x128xf32> to vector<1x16xf32>
    %221 = arith.addf %217, %220 : vector<1x16xf32>
    %222 = vector.extract_strided_slice %213 {offsets = [0, 32], sizes = [1, 16], strides = [1, 1]} : vector<1x128xf32> to vector<1x16xf32>
    %223 = arith.addf %219, %222 : vector<1x16xf32>
    %224 = vector.extract_strided_slice %215 {offsets = [0, 32], sizes = [1, 16], strides = [1, 1]} : vector<1x128xf32> to vector<1x16xf32>
    %225 = arith.addf %221, %224 : vector<1x16xf32>
    %226 = vector.extract_strided_slice %213 {offsets = [0, 48], sizes = [1, 16], strides = [1, 1]} : vector<1x128xf32> to vector<1x16xf32>
    %227 = arith.addf %223, %226 : vector<1x16xf32>
    %228 = vector.extract_strided_slice %215 {offsets = [0, 48], sizes = [1, 16], strides = [1, 1]} : vector<1x128xf32> to vector<1x16xf32>
    %229 = arith.addf %225, %228 : vector<1x16xf32>
    %cst_75 = arith.constant 1.600000e+01 : f32
    %230 = vector.broadcast %cst_75 : f32 to vector<1x16xf32>
    %231 = arith.divf %227, %230 : vector<1x16xf32>
    %cst_76 = arith.constant 1.600000e+01 : f32
    %232 = vector.broadcast %cst_76 : f32 to vector<1x16xf32>
    %233 = arith.divf %229, %232 : vector<1x16xf32>
    %234 = arith.mulf %231, %231 : vector<1x16xf32>
    %235 = arith.subf %233, %234 : vector<1x16xf32>
    %cst_77 = arith.constant 0.000000e+00 : f32
    %236 = vector.broadcast %cst_77 : f32 to vector<1x16xf32>
    %237 = arith.maximumf %235, %236 : vector<1x16xf32>
    %cst_78 = arith.constant 9.99999974E-6 : f32
    %238 = vector.broadcast %cst_78 : f32 to vector<1x16xf32>
    %239 = arith.addf %237, %238 : vector<1x16xf32>
    %240 = math.rsqrt %239 : vector<1x16xf32>
    %cst_79 = arith.constant 0.000000e+00 : f32
    %241 = vector.broadcast %cst_79 : f32 to vector<1x16xf32>
    %242 = arith.subf %241, %231 : vector<1x16xf32>
    %243 = arith.mulf %242, %240 : vector<1x16xf32>
    %cst_80 = arith.constant 0.000000e+00 : f32
    %244 = vector.broadcast %cst_80 : f32 to vector<1x64xf32>
    %245 = tpu.concatenate %240, %240, %240, %240, %244 in 1 : vector<1x16xf32>, vector<1x16xf32>, vector<1x16xf32>, vector<1x16xf32>, vector<1x64xf32> -> vector<1x128xf32>
    %246 = tpu.concatenate %243, %243, %243, %243, %244 in 1 : vector<1x16xf32>, vector<1x16xf32>, vector<1x16xf32>, vector<1x16xf32>, vector<1x64xf32> -> vector<1x128xf32>
    %247 = vector.broadcast %245 : vector<1x128xf32> to vector<4x128xf32>
    %248 = arith.mulf %210, %247 : vector<4x128xf32>
    %249 = vector.broadcast %246 : vector<1x128xf32> to vector<4x128xf32>
    %250 = arith.addf %248, %249 : vector<4x128xf32>
    %cst_81 = arith.constant 0.000000e+00 : f32
    %251 = vector.broadcast %cst_81 : f32 to vector<4x128xf32>
    %252 = arith.maximumf %250, %251 : vector<4x128xf32>
    %253 = tpu.concatenate %209, %252 in 0 : vector<4x128xf32>, vector<4x128xf32> -> vector<8x128xf32>
    %254 = arith.truncf %253 : vector<8x128xf32> to vector<8x128xbf16>
    %c0_82 = arith.constant 0 : index
    %c0_83 = arith.constant 0 : index
    %255 = vector.load %arg8[%c0_82, %c0_83] : memref<128x128xbf16, #tpu.memory_space<vmem>>, vector<128x128xbf16>
    %cst_84 = arith.constant dense<0.000000e+00> : vector<8x128xf32>
    %256 = tpu.matmul %254, %255, %cst_84 {dimension_numbers = #tpu.dot_dimension_numbers<[1], [0], [0], [1], [0, 0, 1, 1], [], []>} : vector<8x128xbf16>, vector<128x128xbf16>, vector<8x128xf32> -> vector<8x128xf32>
    %c0_85 = arith.constant 0 : index
    %c0_86 = arith.constant 0 : index
    %257 = vector.load %arg9[%c0_85, %c0_86] : memref<4x128xf32, #tpu.memory_space<vmem>>, vector<4x128xf32>
    %258 = vector.extract_strided_slice %12 {offsets = [0, 0], sizes = [1, 16], strides = [1, 1]} : vector<2x128xf32> to vector<1x16xf32>
    %cst_87 = arith.constant 0.000000e+00 : f32
    %259 = vector.broadcast %cst_87 : f32 to vector<1x64xf32>
    %260 = tpu.concatenate %258, %258, %258, %258, %259 in 1 : vector<1x16xf32>, vector<1x16xf32>, vector<1x16xf32>, vector<1x16xf32>, vector<1x64xf32> -> vector<1x128xf32>
    %261 = vector.extract_strided_slice %256 {offsets = [0, 0], sizes = [4, 128], strides = [1, 1]} : vector<8x128xf32> to vector<4x128xf32>
    %262 = vector.broadcast %260 : vector<1x128xf32> to vector<4x128xf32>
    %263 = arith.addf %261, %262 : vector<4x128xf32>
    %cst_88 = arith.constant 0.000000e+00 : f32
    %264 = vector.broadcast %cst_88 : f32 to vector<4x128xf32>
    %265 = arith.maximumf %263, %264 : vector<4x128xf32>
    %266 = arith.mulf %265, %257 : vector<4x128xf32>
    %cst_89 = arith.constant dense<0.000000e+00> : vector<4xf32>
    %267 = vector.multi_reduction <add>, %266, %cst_89 [1] : vector<4x128xf32> to vector<4xf32>
    %268 = vector.shape_cast %267 : vector<4xf32> to vector<4x1xf32>
    %cst_90 = arith.constant dense<0.000000e+00> : vector<1xf32>
    %269 = vector.multi_reduction <add>, %268, %cst_90 [0] : vector<4x1xf32> to vector<1xf32>
    %270 = vector.shape_cast %269 : vector<1xf32> to vector<1x1xf32>
    %271 = vector.extract_strided_slice %12 {offsets = [1, 0], sizes = [1, 16], strides = [1, 1]} : vector<2x128xf32> to vector<1x16xf32>
    %cst_91 = arith.constant 0.000000e+00 : f32
    %272 = vector.broadcast %cst_91 : f32 to vector<1x64xf32>
    %273 = tpu.concatenate %271, %271, %271, %271, %272 in 1 : vector<1x16xf32>, vector<1x16xf32>, vector<1x16xf32>, vector<1x16xf32>, vector<1x64xf32> -> vector<1x128xf32>
    %274 = vector.extract_strided_slice %256 {offsets = [4, 0], sizes = [4, 128], strides = [1, 1]} : vector<8x128xf32> to vector<4x128xf32>
    %275 = vector.broadcast %273 : vector<1x128xf32> to vector<4x128xf32>
    %276 = arith.addf %274, %275 : vector<4x128xf32>
    %cst_92 = arith.constant 0.000000e+00 : f32
    %277 = vector.broadcast %cst_92 : f32 to vector<4x128xf32>
    %278 = arith.maximumf %276, %277 : vector<4x128xf32>
    %279 = arith.mulf %278, %257 : vector<4x128xf32>
    %cst_93 = arith.constant dense<0.000000e+00> : vector<4xf32>
    %280 = vector.multi_reduction <add>, %279, %cst_93 [1] : vector<4x128xf32> to vector<4xf32>
    %281 = vector.shape_cast %280 : vector<4xf32> to vector<4x1xf32>
    %cst_94 = arith.constant dense<0.000000e+00> : vector<1xf32>
    %282 = vector.multi_reduction <add>, %281, %cst_94 [0] : vector<4x1xf32> to vector<1xf32>
    %283 = vector.shape_cast %282 : vector<1xf32> to vector<1x1xf32>
    %284 = tpu.concatenate %270, %283 in 1 : vector<1x1xf32>, vector<1x1xf32> -> vector<1x2xf32>
    %c0_95 = arith.constant 0 : index
    %c0_96 = arith.constant 0 : index
    %285 = vector.load %arg10[%c0_95, %c0_96] : memref<1x1xf32, #tpu.memory_space<vmem>>, vector<1x1xf32>
    %286 = vector.broadcast %285 : vector<1x1xf32> to vector<1x2xf32>
    %287 = arith.addf %284, %286 : vector<1x2xf32>
    %288 = arith.negf %287 : vector<1x2xf32>
    %289 = math.exp %288 : vector<1x2xf32>
    %cst_97 = arith.constant 1.000000e+00 : f32
    %290 = vector.broadcast %cst_97 : f32 to vector<1x2xf32>
    %291 = arith.addf %290, %289 : vector<1x2xf32>
    %292 = arith.divf %290, %291 : vector<1x2xf32>
    %c0_98 = arith.constant 0 : index
    %c0_99 = arith.constant 0 : index
    %c0_100 = arith.constant 0 : index
    %293 = vector.load %arg11[%c0_98, %c0_99, %c0_100] : memref<1x1x2xf32, #tpu.memory_space<vmem>>, vector<1x1x2xf32>
    %294 = vector.shape_cast %293 : vector<1x1x2xf32> to vector<1x2xf32>
    %295 = vector.shape_cast %292 : vector<1x2xf32> to vector<1x1x2xf32>
    tpu.vector_store %arg11[%c0_98, %c0_99, %c0_100], %295 {strides = array<i32>} : memref<1x1x2xf32, #tpu.memory_space<vmem>>, vector<1x1x2xf32>,
    return
  }
  func.func @transform_0(%arg0: i32) -> (i32, i32) {
    %c0_i32 = arith.constant 0 : i32
    %c0_i32_0 = arith.constant 0 : i32
    return %arg0, %c0_i32 : i32, i32
  }
  func.func @transform_1(%arg0: i32) -> (i32, i32, i32) {
    %c0_i32 = arith.constant 0 : i32
    %c0_i32_0 = arith.constant 0 : i32
    %c0_i32_1 = arith.constant 0 : i32
    return %arg0, %c0_i32, %c0_i32_0 : i32, i32, i32
  }
  func.func @transform_2(%arg0: i32) -> (i32, i32) {
    %c0_i32 = arith.constant 0 : i32
    %c0_i32_0 = arith.constant 0 : i32
    %c0_i32_1 = arith.constant 0 : i32
    return %c0_i32, %c0_i32_0 : i32, i32
  }
  func.func @transform_3(%arg0: i32) -> (i32, i32) {
    %c0_i32 = arith.constant 0 : i32
    %c0_i32_0 = arith.constant 0 : i32
    %c0_i32_1 = arith.constant 0 : i32
    return %c0_i32, %c0_i32_0 : i32, i32
  }
  func.func @transform_4(%arg0: i32) -> (i32, i32) {
    %c0_i32 = arith.constant 0 : i32
    %c0_i32_0 = arith.constant 0 : i32
    %c0_i32_1 = arith.constant 0 : i32
    return %c0_i32, %c0_i32_0 : i32, i32
  }
  func.func @transform_5(%arg0: i32) -> (i32, i32) {
    %c0_i32 = arith.constant 0 : i32
    %c0_i32_0 = arith.constant 0 : i32
    %c0_i32_1 = arith.constant 0 : i32
    return %c0_i32, %c0_i32_0 : i32, i32
  }
  func.func @transform_6(%arg0: i32) -> (i32, i32) {
    %c0_i32 = arith.constant 0 : i32
    %c0_i32_0 = arith.constant 0 : i32
    %c0_i32_1 = arith.constant 0 : i32
    return %c0_i32, %c0_i32_0 : i32, i32
  }
  func.func @transform_7(%arg0: i32) -> (i32, i32) {
    %c0_i32 = arith.constant 0 : i32
    %c0_i32_0 = arith.constant 0 : i32
    %c0_i32_1 = arith.constant 0 : i32
    return %c0_i32, %c0_i32_0 : i32, i32
  }
  func.func @transform_8(%arg0: i32) -> (i32, i32) {
    %c0_i32 = arith.constant 0 : i32
    %c0_i32_0 = arith.constant 0 : i32
    %c0_i32_1 = arith.constant 0 : i32
    return %c0_i32, %c0_i32_0 : i32, i32
  }
  func.func @transform_9(%arg0: i32) -> (i32, i32) {
    %c0_i32 = arith.constant 0 : i32
    %c0_i32_0 = arith.constant 0 : i32
    %c0_i32_1 = arith.constant 0 : i32
    return %c0_i32, %c0_i32_0 : i32, i32
  }
  func.func @transform_10(%arg0: i32) -> (i32, i32, i32) {
    %c0_i32 = arith.constant 0 : i32
    %c0_i32_0 = arith.constant 0 : i32
    %c0_i32_1 = arith.constant 0 : i32
    return %arg0, %c0_i32, %c0_i32_0 : i32, i32, i32
  }
}

</mosaic_0001>

<llo_original>
// kernel: forward.1
$region0: #{forward.1}
  #allocation0 [shape = 'u32[]', space=smem, size = 0x4, offset = 0x4, fixed_abs, tag = 'smem constant byte address 0x4 - core index']
  #allocation1 [shape = 'u32[144,128]{1,0:T(1,128)}', space=vmem, size = 0x12000, scoped, tag = 'internal scratch']
  #allocation2 [shape = 'f32[32,128]{1,0:T(8,128)}', space=vmem, size = 0x4000, scoped, tag = 'scratch operand']
  #allocation3 [shape = 'f32[1,1]{1,0:T(1,128)S(1)}', space=vmem, size = 0x200, scoped, tag = 'scoped memory for forward.1']
  %s0 = inlined_call_operand.vmem [shape: f32[96,128], index: 0, kind: input, shape index: {}]
  %s1 = inlined_call_operand.vmem [shape: f32[2,2,128], index: 1, kind: input, shape index: {}]
  %s2 = inlined_call_operand.vmem [shape: bf16[128,128], index: 2, kind: input, shape index: {}]
  %s3 = inlined_call_operand.vmem [shape: f32[1,128], index: 3, kind: input, shape index: {}]
  %s4 = inlined_call_operand.vmem [shape: bf16[128,128], index: 4, kind: input, shape index: {}]
  %s5 = inlined_call_operand.vmem [shape: bf16[512,128], index: 5, kind: input, shape index: {}]
  %s6 = inlined_call_operand.vmem [shape: bf16[512,128], index: 6, kind: input, shape index: {}]
  %s7 = inlined_call_operand.vmem [shape: bf16[128,128], index: 7, kind: input, shape index: {}]
  %s8 = inlined_call_operand.vmem [shape: f32[4,128], index: 8, kind: input, shape index: {}]
  %s9 = inlined_call_operand.<no memory space> [shape: f32[1,1], index: 9, kind: input, shape index: {}]
  %s10 = inlined_call_operand.vmem [shape: f32[2,1,2], index: 10, kind: output, shape index: {}]
  %s11 = sld [smem:[#allocation0]]
  $region73: #{forward.1} parent=0
    _
  %s13 = ssub.s32 1, %s11
  %s14 = scalar_select 0, %s13, %s11
  %v15 = vstv %s9
  %16 = vst [vmem:[#allocation3] sm:$0x1] %v15
  loop: start=0, step=1, limit=4
  $region2: #{forward.1} parent=0 // loop_pre_header
    _
  $region3: #{forward.1} parent=0 // loop_header
    %s18 = sphi 0, %s22
    %p19 = scmp.ge.s32.totalorder %s18, 4
    %s28 = sphi 0, %s30
    %s31 = sphi 0, %s28
    %s32 = sphi 0, %s31
    %s48 = sphi 0, %s32
    %s54 = sphi 0, %s56
    %s57 = sphi 0, %s54
    %s58 = sphi 0, %s57
    %s74 = sphi 0, %s58
    %s78 = sphi 0, %s78
    %s80 = sphi 0, %s78
    %s81 = sphi 0, %s80
    %s95 = sphi 0, %s81
    %s99 = sphi 0, %s99
    %s101 = sphi 0, %s99
    %s102 = sphi 0, %s101
    %s116 = sphi 0, %s102
    %s120 = sphi 0, %s120
    %s122 = sphi 0, %s120
    %s123 = sphi 0, %s122
    %s137 = sphi 0, %s123
    %s141 = sphi 0, %s141
    %s143 = sphi 0, %s141
    %s144 = sphi 0, %s143
    %s158 = sphi 0, %s144
    %s162 = sphi 0, %s162
    %s164 = sphi 0, %s162
    %s165 = sphi 0, %s164
    %s179 = sphi 0, %s165
    %s183 = sphi 0, %s183
    %s185 = sphi 0, %s183
    %s186 = sphi 0, %s185
    %s200 = sphi 0, %s186
    %s204 = sphi 0, %s204
    %s206 = sphi 0, %s204
    %s207 = sphi 0, %s206
    %s221 = sphi 0, %s207
    %s225 = sphi 0, %s225
    %s227 = sphi 0, %s225
    %s228 = sphi 0, %s227
    %s242 = sphi 0, %s228
    %s248 = sphi 0, %s250
    %s251 = sphi 0, %s248
    %s252 = sphi 0, %s251
    %s268 = sphi 0, %s252
  $region4: #{forward.1} parent=0 // loop_header_branch
    %21 = sbr.rel (%p19) target = $region8
  $region5: #{forward.1} parent=0 // loop_body
    %s23 = ssub.s32 %s18, 1
    %s24 = ssub.s32 %s18, 2
    %s25 = sadd.s32 %s18, 1
    %s26 = ssub.s32 %s18, %s25
    %p27 = scmp.eq.s32.totalorder %s26, 0
    %s29 = sadd.s32 %s28, 1
    %s30 = scalar_select %p27, %s28, %s29
    %p33 = pneg %p27
    %p34 = scmp.eq.s32.totalorder %s18, 1
    %p35 = por %p33, %p34
    %p36 = scmp.ne.s32.totalorder %s28, %s31
    %p37 = scmp.eq.s32.totalorder %s18, 0
    %p38 = por %p36, %p37
    %p39 = scmp.ne.s32.totalorder %s28, %s31
    %p40 = scmp.eq.s32.totalorder %s23, 1
    %p41 = por %p39, %p40
    %p42 = scmp.ne.s32.totalorder %s31, %s32
    %p43 = scmp.eq.s32.totalorder %s23, 0
    %p44 = por %p42, %p43
    %p45 = scmp.ne.s32.totalorder %s31, %s32
    %p46 = scmp.eq.s32.totalorder %s24, 1
    %p47 = por %p45, %p46
    %p49 = scmp.ne.s32.totalorder %s32, %s48
    %p50 = scmp.eq.s32.totalorder %s24, 0
    %p51 = por %p49, %p50
    %s52 = ssub.s32 %s18, %s25
    %p53 = scmp.eq.s32.totalorder %s52, 0
    %s55 = sadd.s32 %s54, 1
    %s56 = scalar_select %p53, %s54, %s55
    %p59 = pneg %p53
    %p60 = scmp.eq.s32.totalorder %s18, 1
    %p61 = por %p59, %p60
    %p62 = scmp.ne.s32.totalorder %s54, %s57
    %p63 = scmp.eq.s32.totalorder %s18, 0
    %p64 = por %p62, %p63
    %p65 = scmp.ne.s32.totalorder %s54, %s57
    %p66 = scmp.eq.s32.totalorder %s23, 1
    %p67 = por %p65, %p66
    %p68 = scmp.ne.s32.totalorder %s57, %s58
    %p69 = scmp.eq.s32.totalorder %s23, 0
    %p70 = por %p68, %p69
    %p71 = scmp.ne.s32.totalorder %s57, %s58
    %p72 = scmp.eq.s32.totalorder %s24, 1
    %p73 = por %p71, %p72
    %p75 = scmp.ne.s32.totalorder %s58, %s74
    %p76 = scmp.eq.s32.totalorder %s24, 0
    %p77 = por %p75, %p76
    %s79 = sadd.s32 %s78, 1
    %p82 = scmp.eq.s32.totalorder %s18, 1
    %p83 = scmp.ne.s32.totalorder %s78, %s80
    %p84 = scmp.eq.s32.totalorder %s18, 0
    %p85 = por %p83, %p84
    %p86 = scmp.ne.s32.totalorder %s78, %s80
    %p87 = scmp.eq.s32.totalorder %s23, 1
    %p88 = por %p86, %p87
    %p89 = scmp.ne.s32.totalorder %s80, %s81
    %p90 = scmp.eq.s32.totalorder %s23, 0
    %p91 = por %p89, %p90
    %p92 = scmp.ne.s32.totalorder %s80, %s81
    %p93 = scmp.eq.s32.totalorder %s24, 1
    %p94 = por %p92, %p93
    %p96 = scmp.ne.s32.totalorder %s81, %s95
    %p97 = scmp.eq.s32.totalorder %s24, 0
    %p98 = por %p96, %p97
    %s100 = sadd.s32 %s99, 1
    %p103 = scmp.eq.s32.totalorder %s18, 1
    %p104 = scmp.ne.s32.totalorder %s99, %s101
    %p105 = scmp.eq.s32.totalorder %s18, 0
    %p106 = por %p104, %p105
    %p107 = scmp.ne.s32.totalorder %s99, %s101
    %p108 = scmp.eq.s32.totalorder %s23, 1
    %p109 = por %p107, %p108
    %p110 = scmp.ne.s32.totalorder %s101, %s102
    %p111 = scmp.eq.s32.totalorder %s23, 0
    %p112 = por %p110, %p111
    %p113 = scmp.ne.s32.totalorder %s101, %s102
    %p114 = scmp.eq.s32.totalorder %s24, 1
    %p115 = por %p113, %p114
    %p117 = scmp.ne.s32.totalorder %s102, %s116
    %p118 = scmp.eq.s32.totalorder %s24, 0
    %p119 = por %p117, %p118
    %s121 = sadd.s32 %s120, 1
    %p124 = scmp.eq.s32.totalorder %s18, 1
    %p125 = scmp.ne.s32.totalorder %s120, %s122
    %p126 = scmp.eq.s32.totalorder %s18, 0
    %p127 = por %p125, %p126
    %p128 = scmp.ne.s32.totalorder %s120, %s122
    %p129 = scmp.eq.s32.totalorder %s23, 1
    %p130 = por %p128, %p129
    %p131 = scmp.ne.s32.totalorder %s122, %s123
    %p132 = scmp.eq.s32.totalorder %s23, 0
    %p133 = por %p131, %p132
    %p134 = scmp.ne.s32.totalorder %s122, %s123
    %p135 = scmp.eq.s32.totalorder %s24, 1
    %p136 = por %p134, %p135
    %p138 = scmp.ne.s32.totalorder %s123, %s137
    %p139 = scmp.eq.s32.totalorder %s24, 0
    %p140 = por %p138, %p139
    %s142 = sadd.s32 %s141, 1
    %p145 = scmp.eq.s32.totalorder %s18, 1
    %p146 = scmp.ne.s32.totalorder %s141, %s143
    %p147 = scmp.eq.s32.totalorder %s18, 0
    %p148 = por %p146, %p147
    %p149 = scmp.ne.s32.totalorder %s141, %s143
    %p150 = scmp.eq.s32.totalorder %s23, 1
    %p151 = por %p149, %p150
    %p152 = scmp.ne.s32.totalorder %s143, %s144
    %p153 = scmp.eq.s32.totalorder %s23, 0
    %p154 = por %p152, %p153
    %p155 = scmp.ne.s32.totalorder %s143, %s144
    %p156 = scmp.eq.s32.totalorder %s24, 1
    %p157 = por %p155, %p156
    %p159 = scmp.ne.s32.totalorder %s144, %s158
    %p160 = scmp.eq.s32.totalorder %s24, 0
    %p161 = por %p159, %p160
    %s163 = sadd.s32 %s162, 1
    %p166 = scmp.eq.s32.totalorder %s18, 1
    %p167 = scmp.ne.s32.totalorder %s162, %s164
    %p168 = scmp.eq.s32.totalorder %s18, 0
    %p169 = por %p167, %p168
    %p170 = scmp.ne.s32.totalorder %s162, %s164
    %p171 = scmp.eq.s32.totalorder %s23, 1
    %p172 = por %p170, %p171
    %p173 = scmp.ne.s32.totalorder %s164, %s165
    %p174 = scmp.eq.s32.totalorder %s23, 0
    %p175 = por %p173, %p174
    %p176 = scmp.ne.s32.totalorder %s164, %s165
    %p177 = scmp.eq.s32.totalorder %s24, 1
    %p178 = por %p176, %p177
    %p180 = scmp.ne.s32.totalorder %s165, %s179
    %p181 = scmp.eq.s32.totalorder %s24, 0
    %p182 = por %p180, %p181
    %s184 = sadd.s32 %s183, 1
    %p187 = scmp.eq.s32.totalorder %s18, 1
    %p188 = scmp.ne.s32.totalorder %s183, %s185
    %p189 = scmp.eq.s32.totalorder %s18, 0
    %p190 = por %p188, %p189
    %p191 = scmp.ne.s32.totalorder %s183, %s185
    %p192 = scmp.eq.s32.totalorder %s23, 1
    %p193 = por %p191, %p192
    %p194 = scmp.ne.s32.totalorder %s185, %s186
    %p195 = scmp.eq.s32.totalorder %s23, 0
    %p196 = por %p194, %p195
    %p197 = scmp.ne.s32.totalorder %s185, %s186
    %p198 = scmp.eq.s32.totalorder %s24, 1
    %p199 = por %p197, %p198
    %p201 = scmp.ne.s32.totalorder %s186, %s200
    %p202 = scmp.eq.s32.totalorder %s24, 0
    %p203 = por %p201, %p202
    %s205 = sadd.s32 %s204, 1
    %p208 = scmp.eq.s32.totalorder %s18, 1
    %p209 = scmp.ne.s32.totalorder %s204, %s206
    %p210 = scmp.eq.s32.totalorder %s18, 0
    %p211 = por %p209, %p210
    %p212 = scmp.ne.s32.totalorder %s204, %s206
    %p213 = scmp.eq.s32.totalorder %s23, 1
    %p214 = por %p212, %p213
    %p215 = scmp.ne.s32.totalorder %s206, %s207
    %p216 = scmp.eq.s32.totalorder %s23, 0
    %p217 = por %p215, %p216
    %p218 = scmp.ne.s32.totalorder %s206, %s207
    %p219 = scmp.eq.s32.totalorder %s24, 1
    %p220 = por %p218, %p219
    %p222 = scmp.ne.s32.totalorder %s207, %s221
    %p223 = scmp.eq.s32.totalorder %s24, 0
    %p224 = por %p222, %p223
    %s226 = sadd.s32 %s225, 1
    %p229 = scmp.eq.s32.totalorder %s18, 1
    %p230 = scmp.ne.s32.totalorder %s225, %s227
    %p231 = scmp.eq.s32.totalorder %s18, 0
    %p232 = por %p230, %p231
    %p233 = scmp.ne.s32.totalorder %s225, %s227
    %p234 = scmp.eq.s32.totalorder %s23, 1
    %p235 = por %p233, %p234
    %p236 = scmp.ne.s32.totalorder %s227, %s228
    %p237 = scmp.eq.s32.totalorder %s23, 0
    %p238 = por %p236, %p237
    %p239 = scmp.ne.s32.totalorder %s227, %s228
    %p240 = scmp.eq.s32.totalorder %s24, 1
    %p241 = por %p239, %p240
    %p243 = scmp.ne.s32.totalorder %s228, %s242
    %p244 = scmp.eq.s32.totalorder %s24, 0
    %p245 = por %p243, %p244
    %s246 = ssub.s32 %s18, %s25
    %p247 = scmp.eq.s32.totalorder %s246, 0
    %s249 = sadd.s32 %s248, 1
    %s250 = scalar_select %p247, %s248, %s249
    %p253 = pneg %p247
    %p254 = scmp.eq.s32.totalorder %s18, 1
    %p255 = por %p253, %p254
    %p256 = scmp.ne.s32.totalorder %s248, %s251
    %p257 = scmp.eq.s32.totalorder %s18, 0
    %p258 = por %p256, %p257
    %p259 = scmp.ne.s32.totalorder %s248, %s251
    %p260 = scmp.eq.s32.totalorder %s23, 1
    %p261 = por %p259, %p260
    %p262 = scmp.ne.s32.totalorder %s251, %s252
    %p263 = scmp.eq.s32.totalorder %s23, 0
    %p264 = por %p262, %p263
    %p265 = scmp.ne.s32.totalorder %s251, %s252
    %p266 = scmp.eq.s32.totalorder %s24, 1
    %p267 = por %p265, %p266
    %p269 = scmp.ne.s32.totalorder %s252, %s268
    %p270 = scmp.eq.s32.totalorder %s24, 0
    %p271 = por %p269, %p270
    %p272 = scmp.le.s32.totalorder 1, %s18
    %p273 = scmp.lt.s32.totalorder %s18, 3
    %p274 = pnand %p272, %p273
    %p275 = pneg %p274
    // Predicated region
    $region9: #{forward.1} parent=5 // pred_check
      _
    $region10: #{forward.1} parent=5 // pred_check_branch
      %277 = sbr.rel (%p274) target = $region12
    $region11: #{forward.1} parent=5 // pred_region
      %s278 = ssub.s32 %s18, 1
      // Predicated region
      $region13: #{forward.1} parent=11 // pred_check
        %p279 = pneg %p91
      $region14: #{forward.1} parent=11 // pred_check_branch
        %281 = sbr.rel (%p279) target = $region16
      $region15: #{forward.1} parent=11 // pred_region
        _
      $region16: #{forward.1} parent=11 // pred_fallthru
        _
      // Predicated region
      $region17: #{forward.1} parent=11 // pred_check
        %p282 = pneg %p112
      $region18: #{forward.1} parent=11 // pred_check_branch
        %284 = sbr.rel (%p282) target = $region20
      $region19: #{forward.1} parent=11 // pred_region
        _
      $region20: #{forward.1} parent=11 // pred_fallthru
        _
      // Predicated region
      $region21: #{forward.1} parent=11 // pred_check
        %p285 = pneg %p133
      $region22: #{forward.1} parent=11 // pred_check_branch
        %287 = sbr.rel (%p285) target = $region24
      $region23: #{forward.1} parent=11 // pred_region
        _
      $region24: #{forward.1} parent=11 // pred_fallthru
        _
      // Predicated region
      $region25: #{forward.1} parent=11 // pred_check
        %p288 = pneg %p154
      $region26: #{forward.1} parent=11 // pred_check_branch
        %290 = sbr.rel (%p288) target = $region28
      $region27: #{forward.1} parent=11 // pred_region
        _
      $region28: #{forward.1} parent=11 // pred_fallthru
        _
      // Predicated region
      $region29: #{forward.1} parent=11 // pred_check
        %p291 = pneg %p175
      $region30: #{forward.1} parent=11 // pred_check_branch
        %293 = sbr.rel (%p291) target = $region32
      $region31: #{forward.1} parent=11 // pred_region
        _
      $region32: #{forward.1} parent=11 // pred_fallthru
        _
      // Predicated region
      $region33: #{forward.1} parent=11 // pred_check
        %p294 = pneg %p196
      $region34: #{forward.1} parent=11 // pred_check_branch
        %296 = sbr.rel (%p294) target = $region36
      $region35: #{forward.1} parent=11 // pred_region
        _
      $region36: #{forward.1} parent=11 // pred_fallthru
        _
      // Predicated region
      $region37: #{forward.1} parent=11 // pred_check
        %p297 = pneg %p217
      $region38: #{forward.1} parent=11 // pred_check_branch
        %299 = sbr.rel (%p297) target = $region40
      $region39: #{forward.1} parent=11 // pred_region
        _
      $region40: #{forward.1} parent=11 // pred_fallthru
        _
      // Predicated region
      $region41: #{forward.1} parent=11 // pred_check
        %p300 = pneg %p238
      $region42: #{forward.1} parent=11 // pred_check_branch
        %302 = sbr.rel (%p300) target = $region44
      $region43: #{forward.1} parent=11 // pred_region
        _
      $region44: #{forward.1} parent=11 // pred_fallthru
        _
    $region12: #{forward.1} parent=5 // pred_fallthru
      _
    %p303 = scmp.lt.s32.totalorder %s18, 2
    // Predicated region
    $region45: #{forward.1} parent=5 // pred_check
      %p304 = pneg %p303
    $region46: #{forward.1} parent=5 // pred_check_branch
      %306 = sbr.rel (%p304) target = $region48
    $region47: #{forward.1} parent=5 // pred_region
      // Predicated region
      $region49: #{forward.1} parent=47 // pred_check
        %p307 = pneg %p38
      $region50: #{forward.1} parent=47 // pred_check_branch
        %309 = sbr.rel (%p307) target = $region52
      $region51: #{forward.1} parent=47 // pred_region
        %s310 = smul.u32 6, %s18
        %p311 = scmp.lt.s32.totalorder %s310, 11
        %s312 = scalar_select %p311, %s310, 11
        %s313 = smul.addr %s312, 8
        %s314 = scalar_lea.vmem %s0, %s313
        %s315 = smul.u32 6, %s18
      $region52: #{forward.1} parent=47 // pred_fallthru
        _
      // Predicated region
      $region53: #{forward.1} parent=47 // pred_check
        %p316 = pneg %p64
      $region54: #{forward.1} parent=47 // pred_check_branch
        %318 = sbr.rel (%p316) target = $region56
      $region55: #{forward.1} parent=47 // pred_region
        %p319 = scmp.lt.s32.totalorder %s18, 1
        %s320 = scalar_select %p319, %s18, 1
        %s321 = smul.addr %s320, 2
        %s322 = scalar_lea.vmem %s1, %s321
      $region56: #{forward.1} parent=47 // pred_fallthru
        _
    $region48: #{forward.1} parent=5 // pred_fallthru
      _
    %p323 = scmp.le.s32.totalorder 1, %s18
    %p324 = scmp.lt.s32.totalorder %s18, 3
    %p325 = pnand %p323, %p324
    %p326 = pneg %p325
    // Predicated region
    $region57: #{forward.1} parent=5 // pred_check
      _
    $region58: #{forward.1} parent=5 // pred_check_branch
      %328 = sbr.rel (%p325) target = $region60
    $region59: #{forward.1} parent=5 // pred_region
      %s329 = ssub.s32 %s18, 1
      %s330 = smul.u32 6, %s23
      %p331 = scmp.lt.s32.totalorder %s330, 11
      %s332 = scalar_select %p331, %s330, 11
      %s333 = smul.addr %s332, 8
      %s334 = scalar_lea.vmem %s0, %s333
      %p335 = pneg %p44
      %p336 = pneg %p41
      %p337 = scmp.lt.s32.totalorder %s23, 1
      %s338 = scalar_select %p337, %s23, 1
      %s339 = smul.addr %s338, 2
      %s340 = scalar_lea.vmem %s1, %s339
      %p341 = pneg %p70
      %p342 = pneg %p67
      %p343 = pneg %p91
      %p344 = pneg %p88
      %p345 = pneg %p112
      %p346 = pneg %p109
      %p347 = pneg %p133
      %p348 = pneg %p130
      %p349 = pneg %p154
      %p350 = pneg %p151
      %p351 = pneg %p175
      %p352 = pneg %p172
      %p353 = pneg %p196
      %p354 = pneg %p193
      %p355 = pneg %p217
      %p356 = pneg %p214
      %p357 = pneg %p238
      %p358 = pneg %p235
      %p359 = pneg %p264
      %p360 = pneg %p261
      %p361 = scmp.lt.s32.totalorder %s23, 1
      %s362 = scalar_select %p361, %s23, 1
      %s363 = scalar_lea.vmem %s10, %s362
      %s364 = smul.u32 6, %s23
      %p365 = scmp.lt.s32.totalorder %s364, 11
      %s366 = scalar_select %p365, %s364, 11
      %s367 = smul.addr %s366, 8
      %s368 = scalar_lea.vmem %s0, %s367
      %s369 = smul.u32 6, %s23
      %p370 = scmp.lt.s32.totalorder %s23, 1
      %s371 = scalar_select %p370, %s23, 1
      %s372 = smul.addr %s371, 2
      %s373 = scalar_lea.vmem %s1, %s372
      %p374 = scmp.lt.s32.totalorder %s23, 1
      %s375 = scalar_select %p374, %s23, 1
      %s376 = scalar_lea.vmem %s10, %s375
      %v378 = vld [vmem:[%s373] sm:$0x3]
      %v379 = vpack.c.bf16 %v378, %v378
      %v380 = vld [vmem:[%s2] sm:$0xf]
      %v381 = vld [vmem:[%s2 + $0x4] sm:$0xf]
      %v382 = vld [vmem:[%s2 + $0x8] sm:$0xf]
      %v383 = vld [vmem:[%s2 + $0xc] sm:$0xf]
      %v384 = vld [vmem:[%s2 + $0x10] sm:$0xf]
      %v385 = vld [vmem:[%s2 + $0x14] sm:$0xf]
      %v386 = vld [vmem:[%s2 + $0x18] sm:$0xf]
      %v387 = vld [vmem:[%s2 + $0x1c] sm:$0xf]
      %v388 = vld [vmem:[%s2 + $0x20] sm:$0xf]
      %v389 = vld [vmem:[%s2 + $0x24] sm:$0xf]
      %v390 = vld [vmem:[%s2 + $0x28] sm:$0xf]
      %v391 = vld [vmem:[%s2 + $0x2c] sm:$0xf]
      %v392 = vld [vmem:[%s2 + $0x30] sm:$0xf]
      %v393 = vld [vmem:[%s2 + $0x34] sm:$0xf]
      %v394 = vld [vmem:[%s2 + $0x38] sm:$0xf]
      %v395 = vld [vmem:[%s2 + $0x3c] sm:$0xf]
      %v396 = vld [vmem:[%s3] sm:$0x1]
      %v398 = vlaneseq
      %v399 = vshrl.u32 %v398, 7
      %v400 = vsub.s32 0, %v399
      %v401 = vrot.slane %v396, %v400
      %v419 = vunpack.c.l.b16 %v380
      %v420 = vunpack.c.l.b16 %v381
      %v421 = vunpack.c.l.b16 %v382
      %v422 = vunpack.c.l.b16 %v383
      %v423 = vunpack.c.l.b16 %v384
      %v424 = vunpack.c.l.b16 %v385
      %v425 = vunpack.c.l.b16 %v386
      %v426 = vunpack.c.l.b16 %v387
      %v427 = vunpack.c.l.b16 %v388
      %v428 = vunpack.c.l.b16 %v389
      %v429 = vunpack.c.l.b16 %v390
      %v430 = vunpack.c.l.b16 %v391
      %v431 = vunpack.c.l.b16 %v392
      %v432 = vunpack.c.l.b16 %v393
      %v433 = vunpack.c.l.b16 %v394
      %v434 = vunpack.c.l.b16 %v395
      %v435 = vpack.c.b16 %v420, %v419
      %v436 = vpack.c.b16 %v422, %v421
      %v437 = vpack.c.b16 %v424, %v423
      %v438 = vpack.c.b16 %v426, %v425
      %v439 = vpack.c.b16 %v428, %v427
      %v440 = vpack.c.b16 %v430, %v429
      %v441 = vpack.c.b16 %v432, %v431
      %v442 = vpack.c.b16 %v434, %v433
      %451 = vmatprep.subr.bf16.mxu0 0
      %452 = vmatpush1.bf16.msra.mxu0 %v442
      %453 = vmatprep.subr.bf16.mxu0 0
      %454 = vmatpush1.bf16.msra.mxu0 %v441
      %455 = vmatprep.subr.bf16.mxu0 0
      %456 = vmatpush1.bf16.msra.mxu0 %v440
      %457 = vmatprep.subr.bf16.mxu0 0
      %458 = vmatpush1.bf16.msra.mxu0 %v439
      %459 = vmatprep.subr.bf16.mxu0 0
      %460 = vmatpush1.bf16.msra.mxu0 %v438
      %461 = vmatprep.subr.bf16.mxu0 0
      %462 = vmatpush1.bf16.msra.mxu0 %v437
      %463 = vmatprep.subr.bf16.mxu0 0
      %464 = vmatpush1.bf16.msra.mxu0 %v436
      %465 = vmatprep.subr.bf16.mxu0 0
      %466 = vmatpush1.bf16.msra.mxu0 %v435
      %467 = vmatprep.subr.bf16.mxu0 0
      %468 = vmatpush2.bf16.msra.mxu0 0
      %469 = vmatprep.subr.bf16.mxu0 0
      %470 = vmatpush2.bf16.msra.mxu0 0
      %471 = vmatprep.subr.bf16.mxu0 0
      %472 = vmatpush2.bf16.msra.mxu0 0
      %473 = vmatprep.subr.bf16.mxu0 0
      %474 = vmatpush2.bf16.msra.mxu0 0
      %475 = vmatprep.subr.bf16.mxu0 0
      %476 = vmatpush2.bf16.msra.mxu0 0
      %477 = vmatprep.subr.bf16.mxu0 0
      %478 = vmatpush2.bf16.msra.mxu0 0
      %479 = vmatprep.subr.bf16.mxu0 0
      %480 = vmatpush2.bf16.msra.mxu0 0
      %481 = vmatprep.subr.bf16.mxu0 0
      %482 = vmatpush2.bf16.msra.mxu0 0
      %483 = vmatprep.mubr.bf16.mxu0 0
      %484 = vmatmul.mubr.bf16.gmra.mxu0 %v379
      %v485 = vpop.f32.mrf.mxu0
      %v486 = vadd.f32 %v401, %v485
      %v487 = vpop.f32.mrf.mxu0
      %v488 = vpop.f32.mrf.mxu0
      %v489 = vpop.f32.mrf.mxu0
      %490 = vdwg.mxu0
      %v491 = vmax.f32 %v486, 0.0
      %v492 = vpack.c.bf16 %v491, %v491
      %v493 = vld [vmem:[%s4] sm:$0xf]
      %v494 = vld [vmem:[%s4 + $0x4] sm:$0xf]
      %v495 = vld [vmem:[%s4 + $0x8] sm:$0xf]
      %v496 = vld [vmem:[%s4 + $0xc] sm:$0xf]
      %v497 = vld [vmem:[%s4 + $0x10] sm:$0xf]
      %v498 = vld [vmem:[%s4 + $0x14] sm:$0xf]
      %v499 = vld [vmem:[%s4 + $0x18] sm:$0xf]
      %v500 = vld [vmem:[%s4 + $0x1c] sm:$0xf]
      %v501 = vld [vmem:[%s4 + $0x20] sm:$0xf]
      %v502 = vld [vmem:[%s4 + $0x24] sm:$0xf]
      %v503 = vld [vmem:[%s4 + $0x28] sm:$0xf]
      %v504 = vld [vmem:[%s4 + $0x2c] sm:$0xf]
      %v505 = vld [vmem:[%s4 + $0x30] sm:$0xf]
      %v506 = vld [vmem:[%s4 + $0x34] sm:$0xf]
      %v507 = vld [vmem:[%s4 + $0x38] sm:$0xf]
      %v508 = vld [vmem:[%s4 + $0x3c] sm:$0xf]
      %v525 = vunpack.c.l.b16 %v493
      %v526 = vunpack.c.l.b16 %v494
      %v527 = vunpack.c.l.b16 %v495
      %v528 = vunpack.c.l.b16 %v496
      %v529 = vunpack.c.l.b16 %v497
      %v530 = vunpack.c.l.b16 %v498
      %v531 = vunpack.c.l.b16 %v499
      %v532 = vunpack.c.l.b16 %v500
      %v533 = vunpack.c.l.b16 %v501
      %v534 = vunpack.c.l.b16 %v502
      %v535 = vunpack.c.l.b16 %v503
      %v536 = vunpack.c.l.b16 %v504
      %v537 = vunpack.c.l.b16 %v505
      %v538 = vunpack.c.l.b16 %v506
      %v539 = vunpack.c.l.b16 %v507
      %v540 = vunpack.c.l.b16 %v508
      %v541 = vpack.c.b16 %v526, %v525
      %v542 = vpack.c.b16 %v528, %v527
      %v543 = vpack.c.b16 %v530, %v529
      %v544 = vpack.c.b16 %v532, %v531
      %v545 = vpack.c.b16 %v534, %v533
      %v546 = vpack.c.b16 %v536, %v535
      %v547 = vpack.c.b16 %v538, %v537
      %v548 = vpack.c.b16 %v540, %v539
      %557 = vmatprep.subr.bf16.mxu0 0
      %558 = vmatpush1.bf16.msra.mxu0 %v548
      %559 = vmatprep.subr.bf16.mxu0 0
      %560 = vmatpush1.bf16.msra.mxu0 %v547
      %561 = vmatprep.subr.bf16.mxu0 0
      %562 = vmatpush1.bf16.msra.mxu0 %v546
      %563 = vmatprep.subr.bf16.mxu0 0
      %564 = vmatpush1.bf16.msra.mxu0 %v545
      %565 = vmatprep.subr.bf16.mxu0 0
      %566 = vmatpush1.bf16.msra.mxu0 %v544
      %567 = vmatprep.subr.bf16.mxu0 0
      %568 = vmatpush1.bf16.msra.mxu0 %v543
      %569 = vmatprep.subr.bf16.mxu0 0
      %570 = vmatpush1.bf16.msra.mxu0 %v542
      %571 = vmatprep.subr.bf16.mxu0 0
      %572 = vmatpush1.bf16.msra.mxu0 %v541
      %573 = vmatprep.subr.bf16.mxu0 0
      %574 = vmatpush2.bf16.msra.mxu0 0
      %575 = vmatprep.subr.bf16.mxu0 0
      %576 = vmatpush2.bf16.msra.mxu0 0
      %577 = vmatprep.subr.bf16.mxu0 0
      %578 = vmatpush2.bf16.msra.mxu0 0
      %579 = vmatprep.subr.bf16.mxu0 0
      %580 = vmatpush2.bf16.msra.mxu0 0
      %581 = vmatprep.subr.bf16.mxu0 0
      %582 = vmatpush2.bf16.msra.mxu0 0
      %583 = vmatprep.subr.bf16.mxu0 0
      %584 = vmatpush2.bf16.msra.mxu0 0
      %585 = vmatprep.subr.bf16.mxu0 0
      %586 = vmatpush2.bf16.msra.mxu0 0
      %587 = vmatprep.subr.bf16.mxu0 0
      %588 = vmatpush2.bf16.msra.mxu0 0
      %589 = vmatprep.mubr.bf16.mxu0 0
      %590 = vmatmul.mubr.bf16.gmra.mxu0 %v492
      %v591 = vpop.f32.mrf.mxu0
      %v592 = vadd.f32 0.0, %v591
      %v593 = vpop.f32.mrf.mxu0
      %v594 = vpop.f32.mrf.mxu0
      %v595 = vpop.f32.mrf.mxu0
      %596 = vdwg.mxu0
      %v597 = vld [vmem:[%s368] ss:$2 sm:$0xff]
      %s598 = scalar_lea.vmem %s368, 1
      %v599 = vld [vmem:[%s598] ss:$2 sm:$0xff]
      %s600 = scalar_lea.vmem %s368, 2
      %v601 = vld [vmem:[%s600] ss:$2 sm:$0xff]
      %s602 = scalar_lea.vmem %s368, 3
      %v603 = vld [vmem:[%s602] ss:$2 sm:$0xff]
      %s604 = scalar_lea.vmem %s368, 24
      %v605 = vld [vmem:[%s604] ss:$2 sm:$0xff]
      %s606 = scalar_lea.vmem %s368, 25
      %v607 = vld [vmem:[%s606] ss:$2 sm:$0xff]
      %s608 = scalar_lea.vmem %s368, 26
      %v609 = vld [vmem:[%s608] ss:$2 sm:$0xff]
      %s610 = scalar_lea.vmem %s368, 27
      %v611 = vld [vmem:[%s610] ss:$2 sm:$0xff]
      %v612 = vpack.c.bf16 %v605, %v597
      %v613 = vpack.c.bf16 %v607, %v599
      %v614 = vpack.c.bf16 %v609, %v601
      %v615 = vpack.c.bf16 %v611, %v603
      %v616 = vld [vmem:[%s5] sm:$0xf]
      %v617 = vld [vmem:[%s5 + $0x4] sm:$0xf]
      %v618 = vld [vmem:[%s5 + $0x8] sm:$0xf]
      %v619 = vld [vmem:[%s5 + $0xc] sm:$0xf]
      %v620 = vld [vmem:[%s5 + $0x10] sm:$0xf]
      %v621 = vld [vmem:[%s5 + $0x14] sm:$0xf]
      %v622 = vld [vmem:[%s5 + $0x18] sm:$0xf]
      %v623 = vld [vmem:[%s5 + $0x1c] sm:$0xf]
      %v624 = vld [vmem:[%s5 + $0x20] sm:$0xf]
      %v625 = vld [vmem:[%s5 + $0x24] sm:$0xf]
      %v626 = vld [vmem:[%s5 + $0x28] sm:$0xf]
      %v627 = vld [vmem:[%s5 + $0x2c] sm:$0xf]
      %v628 = vld [vmem:[%s5 + $0x30] sm:$0xf]
      %v629 = vld [vmem:[%s5 + $0x34] sm:$0xf]
      %v630 = vld [vmem:[%s5 + $0x38] sm:$0xf]
      %v631 = vld [vmem:[%s5 + $0x3c] sm:$0xf]
      %v632 = vld [vmem:[%s5 + $0x40] sm:$0xf]
      %v633 = vld [vmem:[%s5 + $0x44] sm:$0xf]
      %v634 = vld [vmem:[%s5 + $0x48] sm:$0xf]
      %v635 = vld [vmem:[%s5 + $0x4c] sm:$0xf]
      %v636 = vld [vmem:[%s5 + $0x50] sm:$0xf]
      %v637 = vld [vmem:[%s5 + $0x54] sm:$0xf]
      %v638 = vld [vmem:[%s5 + $0x58] sm:$0xf]
      %v639 = vld [vmem:[%s5 + $0x5c] sm:$0xf]
      %v640 = vld [vmem:[%s5 + $0x60] sm:$0xf]
      %v641 = vld [vmem:[%s5 + $0x64] sm:$0xf]
      %v642 = vld [vmem:[%s5 + $0x68] sm:$0xf]
      %v643 = vld [vmem:[%s5 + $0x6c] sm:$0xf]
      %v644 = vld [vmem:[%s5 + $0x70] sm:$0xf]
      %v645 = vld [vmem:[%s5 + $0x74] sm:$0xf]
      %v646 = vld [vmem:[%s5 + $0x78] sm:$0xf]
      %v647 = vld [vmem:[%s5 + $0x7c] sm:$0xf]
      %v648 = vld [vmem:[%s5 + $0x80] sm:$0xf]
      %v649 = vld [vmem:[%s5 + $0x84] sm:$0xf]
      %v650 = vld [vmem:[%s5 + $0x88] sm:$0xf]
      %v651 = vld [vmem:[%s5 + $0x8c] sm:$0xf]
      %v652 = vld [vmem:[%s5 + $0x90] sm:$0xf]
      %v653 = vld [vmem:[%s5 + $0x94] sm:$0xf]
      %v654 = vld [vmem:[%s5 + $0x98] sm:$0xf]
      %v655 = vld [vmem:[%s5 + $0x9c] sm:$0xf]
      %v656 = vld [vmem:[%s5 + $0xa0] sm:$0xf]
      %v657 = vld [vmem:[%s5 + $0xa4] sm:$0xf]
      %v658 = vld [vmem:[%s5 + $0xa8] sm:$0xf]
      %v659 = vld [vmem:[%s5 + $0xac] sm:$0xf]
      %v660 = vld [vmem:[%s5 + $0xb0] sm:$0xf]
      %v661 = vld [vmem:[%s5 + $0xb4] sm:$0xf]
      %v662 = vld [vmem:[%s5 + $0xb8] sm:$0xf]
      %v663 = vld [vmem:[%s5 + $0xbc] sm:$0xf]
      %v664 = vld [vmem:[%s5 + $0xc0] sm:$0xf]
      %v665 = vld [vmem:[%s5 + $0xc4] sm:$0xf]
      %v666 = vld [vmem:[%s5 + $0xc8] sm:$0xf]
      %v667 = vld [vmem:[%s5 + $0xcc] sm:$0xf]
      %v668 = vld [vmem:[%s5 + $0xd0] sm:$0xf]
      %v669 = vld [vmem:[%s5 + $0xd4] sm:$0xf]
      %v670 = vld [vmem:[%s5 + $0xd8] sm:$0xf]
      %v671 = vld [vmem:[%s5 + $0xdc] sm:$0xf]
      %v672 = vld [vmem:[%s5 + $0xe0] sm:$0xf]
      %v673 = vld [vmem:[%s5 + $0xe4] sm:$0xf]
      %v674 = vld [vmem:[%s5 + $0xe8] sm:$0xf]
      %v675 = vld [vmem:[%s5 + $0xec] sm:$0xf]
      %v676 = vld [vmem:[%s5 + $0xf0] sm:$0xf]
      %v677 = vld [vmem:[%s5 + $0xf4] sm:$0xf]
      %v678 = vld [vmem:[%s5 + $0xf8] sm:$0xf]
      %v679 = vld [vmem:[%s5 + $0xfc] sm:$0xf]
      %v744 = vunpack.c.l.b16 %v616
      %v745 = vunpack.c.l.b16 %v617
      %v746 = vunpack.c.l.b16 %v618
      %v747 = vunpack.c.l.b16 %v619
      %v748 = vunpack.c.l.b16 %v620
      %v749 = vunpack.c.l.b16 %v621
      %v750 = vunpack.c.l.b16 %v622
      %v751 = vunpack.c.l.b16 %v623
      %v752 = vunpack.c.l.b16 %v624
      %v753 = vunpack.c.l.b16 %v625
      %v754 = vunpack.c.l.b16 %v626
      %v755 = vunpack.c.l.b16 %v627
      %v756 = vunpack.c.l.b16 %v628
      %v757 = vunpack.c.l.b16 %v629
      %v758 = vunpack.c.l.b16 %v630
      %v759 = vunpack.c.l.b16 %v631
      %v760 = vunpack.c.l.b16 %v632
      %v761 = vunpack.c.l.b16 %v633
      %v762 = vunpack.c.l.b16 %v634
      %v763 = vunpack.c.l.b16 %v635
      %v764 = vunpack.c.l.b16 %v636
      %v765 = vunpack.c.l.b16 %v637
      %v766 = vunpack.c.l.b16 %v638
      %v767 = vunpack.c.l.b16 %v639
      %v768 = vunpack.c.l.b16 %v640
      %v769 = vunpack.c.l.b16 %v641
      %v770 = vunpack.c.l.b16 %v642
      %v771 = vunpack.c.l.b16 %v643
      %v772 = vunpack.c.l.b16 %v644
      %v773 = vunpack.c.l.b16 %v645
      %v774 = vunpack.c.l.b16 %v646
      %v775 = vunpack.c.l.b16 %v647
      %v776 = vunpack.c.l.b16 %v648
      %v777 = vunpack.c.l.b16 %v649
      %v778 = vunpack.c.l.b16 %v650
      %v779 = vunpack.c.l.b16 %v651
      %v780 = vunpack.c.l.b16 %v652
      %v781 = vunpack.c.l.b16 %v653
      %v782 = vunpack.c.l.b16 %v654
      %v783 = vunpack.c.l.b16 %v655
      %v784 = vunpack.c.l.b16 %v656
      %v785 = vunpack.c.l.b16 %v657
      %v786 = vunpack.c.l.b16 %v658
      %v787 = vunpack.c.l.b16 %v659
      %v788 = vunpack.c.l.b16 %v660
      %v789 = vunpack.c.l.b16 %v661
      %v790 = vunpack.c.l.b16 %v662
      %v791 = vunpack.c.l.b16 %v663
      %v792 = vunpack.c.l.b16 %v664
      %v793 = vunpack.c.l.b16 %v665
      %v794 = vunpack.c.l.b16 %v666
      %v795 = vunpack.c.l.b16 %v667
      %v796 = vunpack.c.l.b16 %v668
      %v797 = vunpack.c.l.b16 %v669
      %v798 = vunpack.c.l.b16 %v670
      %v799 = vunpack.c.l.b16 %v671
      %v800 = vunpack.c.l.b16 %v672
      %v801 = vunpack.c.l.b16 %v673
      %v802 = vunpack.c.l.b16 %v674
      %v803 = vunpack.c.l.b16 %v675
      %v804 = vunpack.c.l.b16 %v676
      %v805 = vunpack.c.l.b16 %v677
      %v806 = vunpack.c.l.b16 %v678
      %v807 = vunpack.c.l.b16 %v679
      %v808 = vpack.c.b16 %v745, %v744
      %v809 = vpack.c.b16 %v747, %v746
      %v810 = vpack.c.b16 %v749, %v748
      %v811 = vpack.c.b16 %v751, %v750
      %v812 = vpack.c.b16 %v753, %v752
      %v813 = vpack.c.b16 %v755, %v754
      %v814 = vpack.c.b16 %v757, %v756
      %v815 = vpack.c.b16 %v759, %v758
      %v816 = vpack.c.b16 %v761, %v760
      %v817 = vpack.c.b16 %v763, %v762
      %v818 = vpack.c.b16 %v765, %v764
      %v819 = vpack.c.b16 %v767, %v766
      %v820 = vpack.c.b16 %v769, %v768
      %v821 = vpack.c.b16 %v771, %v770
      %v822 = vpack.c.b16 %v773, %v772
      %v823 = vpack.c.b16 %v775, %v774
      %v824 = vpack.c.b16 %v777, %v776
      %v825 = vpack.c.b16 %v779, %v778
      %v826 = vpack.c.b16 %v781, %v780
      %v827 = vpack.c.b16 %v783, %v782
      %v828 = vpack.c.b16 %v785, %v784
      %v829 = vpack.c.b16 %v787, %v786
      %v830 = vpack.c.b16 %v789, %v788
      %v831 = vpack.c.b16 %v791, %v790
      %v832 = vpack.c.b16 %v793, %v792
      %v833 = vpack.c.b16 %v795, %v794
      %v834 = vpack.c.b16 %v797, %v796
      %v835 = vpack.c.b16 %v799, %v798
      %v836 = vpack.c.b16 %v801, %v800
      %v837 = vpack.c.b16 %v803, %v802
      %v838 = vpack.c.b16 %v805, %v804
      %v839 = vpack.c.b16 %v807, %v806
      %872 = vmatprep.subr.bf16.mxu0 0
      %873 = vmatpush1.bf16.msra.mxu0 %v815
      %874 = vmatprep.subr.bf16.mxu0 0
      %875 = vmatpush1.bf16.msra.mxu0 %v814
      %876 = vmatprep.subr.bf16.mxu0 0
      %877 = vmatpush1.bf16.msra.mxu0 %v813
      %878 = vmatprep.subr.bf16.mxu0 0
      %879 = vmatpush1.bf16.msra.mxu0 %v812
      %880 = vmatprep.subr.bf16.mxu0 0
      %881 = vmatpush1.bf16.msra.mxu0 %v811
      %882 = vmatprep.subr.bf16.mxu0 0
      %883 = vmatpush1.bf16.msra.mxu0 %v810
      %884 = vmatprep.subr.bf16.mxu0 0
      %885 = vmatpush1.bf16.msra.mxu0 %v809
      %886 = vmatprep.subr.bf16.mxu0 0
      %887 = vmatpush1.bf16.msra.mxu0 %v808
      %888 = vmatprep.subr.bf16.mxu0 0
      %889 = vmatpush2.bf16.msra.mxu0 %v823
      %890 = vmatprep.subr.bf16.mxu0 0
      %891 = vmatpush2.bf16.msra.mxu0 %v822
      %892 = vmatprep.subr.bf16.mxu0 0
      %893 = vmatpush2.bf16.msra.mxu0 %v821
      %894 = vmatprep.subr.bf16.mxu0 0
      %895 = vmatpush2.bf16.msra.mxu0 %v820
      %896 = vmatprep.subr.bf16.mxu0 0
      %897 = vmatpush2.bf16.msra.mxu0 %v819
      %898 = vmatprep.subr.bf16.mxu0 0
      %899 = vmatpush2.bf16.msra.mxu0 %v818
      %900 = vmatprep.subr.bf16.mxu0 0
      %901 = vmatpush2.bf16.msra.mxu0 %v817
      %902 = vmatprep.subr.bf16.mxu0 0
      %903 = vmatpush2.bf16.msra.mxu0 %v816
      %904 = vmatprep.mubr.bf16.mxu0 %v613
      %905 = vmatmul.mubr.bf16.gmra.mxu0 %v612
      %v906 = vpop.f32.mrf.mxu0
      %v907 = vadd.f32 0.0, %v906
      %v908 = vpop.f32.mrf.mxu0
      %v909 = vpop.f32.mrf.mxu0
      %v910 = vadd.f32 0.0, %v909
      %v911 = vpop.f32.mrf.mxu0
      %912 = vdwg.mxu0
      %913 = vmatprep.subr.bf16.mxu0 0
      %914 = vmatpush1.bf16.msra.mxu0 %v831
      %915 = vmatprep.subr.bf16.mxu0 0
      %916 = vmatpush1.bf16.msra.mxu0 %v830
      %917 = vmatprep.subr.bf16.mxu0 0
      %918 = vmatpush1.bf16.msra.mxu0 %v829
      %919 = vmatprep.subr.bf16.mxu0 0
      %920 = vmatpush1.bf16.msra.mxu0 %v828
      %921 = vmatprep.subr.bf16.mxu0 0
      %922 = vmatpush1.bf16.msra.mxu0 %v827
      %923 = vmatprep.subr.bf16.mxu0 0
      %924 = vmatpush1.bf16.msra.mxu0 %v826
      %925 = vmatprep.subr.bf16.mxu0 0
      %926 = vmatpush1.bf16.msra.mxu0 %v825
      %927 = vmatprep.subr.bf16.mxu0 0
      %928 = vmatpush1.bf16.msra.mxu0 %v824
      %929 = vmatprep.subr.bf16.mxu0 0
      %930 = vmatpush2.bf16.msra.mxu0 %v839
      %931 = vmatprep.subr.bf16.mxu0 0
      %932 = vmatpush2.bf16.msra.mxu0 %v838
      %933 = vmatprep.subr.bf16.mxu0 0
      %934 = vmatpush2.bf16.msra.mxu0 %v837
      %935 = vmatprep.subr.bf16.mxu0 0
      %936 = vmatpush2.bf16.msra.mxu0 %v836
      %937 = vmatprep.subr.bf16.mxu0 0
      %938 = vmatpush2.bf16.msra.mxu0 %v835
      %939 = vmatprep.subr.bf16.mxu0 0
      %940 = vmatpush2.bf16.msra.mxu0 %v834
      %941 = vmatprep.subr.bf16.mxu0 0
      %942 = vmatpush2.bf16.msra.mxu0 %v833
      %943 = vmatprep.subr.bf16.mxu0 0
      %944 = vmatpush2.bf16.msra.mxu0 %v832
      %945 = vmatprep.mubr.bf16.mxu0 %v615
      %946 = vmatmul.mubr.bf16.gmra.mxu0 %v614
      %v947 = vpop.f32.mrf.mxu0
      %v948 = vadd.f32 %v907, %v947
      %v949 = vpop.f32.mrf.mxu0
      %v950 = vpop.f32.mrf.mxu0
      %v951 = vadd.f32 %v910, %v950
      %v952 = vpop.f32.mrf.mxu0
      %953 = vdwg.mxu0
      %v954 = vmul.f32 %v948, %v948
      %v955 = vmul.f32 %v951, %v951
      %956 = vst [vmem:[#allocation2] sm:$0xff] 0.0
      %957 = vst [vmem:[#allocation2 + $0x8] sm:$0xff] 0.0
      %958 = vst [vmem:[#allocation2 + $0x10] sm:$0xff] 0.0
      %959 = vst [vmem:[#allocation2 + $0x18] sm:$0xff] 0.0
      %v960 = vrot.slane %v948, 4
      %v961 = vadd.f32 %v948, %v960
      %v962 = vrot.slane %v961, 2
      %v963 = vadd.f32 %v961, %v962
      %v964 = vrot.slane %v963, 1
      %v965 = vadd.f32 %v963, %v964
      %v966 = vrot.slane %v954, 4
      %v967 = vadd.f32 %v954, %v966
      %v968 = vrot.slane %v967, 2
      %v969 = vadd.f32 %v967, %v968
      %v970 = vrot.slane %v969, 1
      %v971 = vadd.f32 %v969, %v970
      %973 = vrot.lane.b32.xlu0 %v965, 120
      %v974 = vpop.permute.xlu0 %973
      %v976 = vadd.f32 %v965, %v974
      %978 = vrot.lane.b32.xlu0 %v971, 120
      %v979 = vpop.permute.xlu0 %978
      %v981 = vadd.f32 %v971, %v979
      %982 = vrot.lane.b32.xlu0 %v965, 112
      %v983 = vpop.permute.xlu0 %982
      %v985 = vadd.f32 %v976, %v983
      %986 = vrot.lane.b32.xlu0 %v971, 112
      %v987 = vpop.permute.xlu0 %986
      %v989 = vadd.f32 %v981, %v987
      %990 = vrot.lane.b32.xlu0 %v965, 104
      %v991 = vpop.permute.xlu0 %990
      %v993 = vadd.f32 %v985, %v991
      %994 = vrot.lane.b32.xlu0 %v971, 104
      %v995 = vpop.permute.xlu0 %994
      %v997 = vadd.f32 %v989, %v995
      %998 = vrot.lane.b32.xlu0 %v965, 96
      %v999 = vpop.permute.xlu0 %998
      %v1001 = vadd.f32 %v993, %v999
      %1002 = vrot.lane.b32.xlu0 %v971, 96
      %v1003 = vpop.permute.xlu0 %1002
      %v1005 = vadd.f32 %v997, %v1003
      %1006 = vrot.lane.b32.xlu0 %v965, 88
      %v1007 = vpop.permute.xlu0 %1006
      %v1009 = vadd.f32 %v1001, %v1007
      %1010 = vrot.lane.b32.xlu0 %v971, 88
      %v1011 = vpop.permute.xlu0 %1010
      %v1013 = vadd.f32 %v1005, %v1011
      %1014 = vrot.lane.b32.xlu0 %v965, 80
      %v1015 = vpop.permute.xlu0 %1014
      %v1017 = vadd.f32 %v1009, %v1015
      %1018 = vrot.lane.b32.xlu0 %v971, 80
      %v1019 = vpop.permute.xlu0 %1018
      %v1021 = vadd.f32 %v1013, %v1019
      %1022 = vrot.lane.b32.xlu0 %v965, 72
      %v1023 = vpop.permute.xlu0 %1022
      %v1025 = vadd.f32 %v1017, %v1023
      %1026 = vrot.lane.b32.xlu0 %v971, 72
      %v1027 = vpop.permute.xlu0 %1026
      %v1029 = vadd.f32 %v1021, %v1027
      %v1030 = vrcp.pop 64.0
      %v1031 = vmul.f32 %v1025, %v1030
      %v1032 = vmul.f32 %v1029, %v1030
      %v1033 = vmul.f32 %v1031, %v1031
      %v1034 = vsub.f32 %v1032, %v1033
      %v1035 = vmax.f32 %v1034, 0.0
      %v1036 = vadd.f32 %v1035, 1e-05
      %v1037 = vrsqrt.pop %v1036
      %v1038 = vsub.f32 0.0, %v1031
      %v1039 = vmul.f32 %v1038, %v1037
      %1041 = vrot.lane.b32.xlu0 %v1037, 120
      %v1042 = vpop.permute.xlu0 %1041
      %1044 = vrot.lane.b32.xlu0 %v1037, 8
      %v1045 = vpop.permute.xlu0 %1044
      %1047 = vrot.lane.b32.xlu0 %v1037, 16
      %v1048 = vpop.permute.xlu0 %1047
      %1050 = vrot.lane.b32.xlu0 %v1037, 24
      %v1051 = vpop.permute.xlu0 %1050
      %1053 = vrot.lane.b32.xlu0 %v1037, 32
      %v1054 = vpop.permute.xlu0 %1053
      %1056 = vrot.lane.b32.xlu0 %v1037, 40
      %v1057 = vpop.permute.xlu0 %1056
      %1059 = vrot.lane.b32.xlu0 %v1037, 48
      %v1060 = vpop.permute.xlu0 %1059
      %1062 = vrot.lane.b32.xlu0 %v1037, 56
      %v1063 = vpop.permute.xlu0 %1062
      %1065 = vrot.lane.b32.xlu0 %v1037, 64
      %v1066 = vpop.permute.xlu0 %1065
      %vm1068 = vcmask 64512
      %v1069 = vsel %vm1068, %v1042, %v1037
      %vm1070 = vcmask 130048
      %v1071 = vsel %vm1070, %v1069, %v1045
      %vm1072 = vcmask 195584
      %v1073 = vsel %vm1072, %v1071, %v1048
      %vm1074 = vcmask 261120
      %v1075 = vsel %vm1074, %v1073, %v1051
      %vm1076 = vcmask 326656
      %v1077 = vsel %vm1076, %v1075, %v1054
      %vm1078 = vcmask 392192
      %v1079 = vsel %vm1078, %v1077, %v1057
      %vm1080 = vcmask 457728
      %v1081 = vsel %vm1080, %v1079, %v1060
      %vm1082 = vcmask 523264
      %v1083 = vsel %vm1082, %v1081, %v1063
      %vm1084 = vcmask 588800
      %v1085 = vsel %vm1084, %v1083, %v1066
      %vm1086 = vcmask 654336
      %v1087 = vsel %vm1086, %v1085, 0.0
      %1089 = vrot.lane.b32.xlu0 %v1039, 8
      %v1090 = vpop.permute.xlu0 %1089
      %1092 = vrot.lane.b32.xlu0 %v1039, 16
      %v1093 = vpop.permute.xlu0 %1092
      %1095 = vrot.lane.b32.xlu0 %v1039, 24
      %v1096 = vpop.permute.xlu0 %1095
      %1098 = vrot.lane.b32.xlu0 %v1039, 32
      %v1099 = vpop.permute.xlu0 %1098
      %1101 = vrot.lane.b32.xlu0 %v1039, 40
      %v1102 = vpop.permute.xlu0 %1101
      %1104 = vrot.lane.b32.xlu0 %v1039, 48
      %v1105 = vpop.permute.xlu0 %1104
      %1107 = vrot.lane.b32.xlu0 %v1039, 56
      %v1108 = vpop.permute.xlu0 %1107
      %v1110 = vsel %vm1068, 0.0, %v1039
      %v1111 = vsel %vm1070, %v1110, %v1090
      %v1112 = vsel %vm1072, %v1111, %v1093
      %v1113 = vsel %vm1074, %v1112, %v1096
      %v1114 = vsel %vm1076, %v1113, %v1099
      %v1115 = vsel %vm1078, %v1114, %v1102
      %v1116 = vsel %vm1080, %v1115, %v1105
      %v1117 = vsel %vm1082, %v1116, %v1108
      %v1118 = vsel %vm1084, %v1117, 0.0
      %v1119 = vsel %vm1086, %v1118, 0.0
      %v1120 = vlaneseq
      %v1121 = vshrl.u32 %v1120, 7
      %v1122 = vsub.s32 0, %v1121
      %v1123 = vrot.slane %v1087, %v1122
      %v1124 = vmul.f32 %v948, %v1123
      %v1125 = vlaneseq
      %v1126 = vshrl.u32 %v1125, 7
      %v1127 = vsub.s32 0, %v1126
      %v1128 = vrot.slane %v1119, %v1127
      %v1129 = vadd.f32 %v1124, %v1128
      %v1130 = vmax.f32 %v1129, 0.0
      %1131 = vst [vmem:[#allocation2 + $0x1] sm:$0xff] %v1130
      %v1132 = vrot.slane %v951, 4
      %v1133 = vadd.f32 %v951, %v1132
      %v1134 = vrot.slane %v1133, 2
      %v1135 = vadd.f32 %v1133, %v1134
      %v1136 = vrot.slane %v1135, 1
      %v1137 = vadd.f32 %v1135, %v1136
      %v1138 = vrot.slane %v955, 4
      %v1139 = vadd.f32 %v955, %v1138
      %v1140 = vrot.slane %v1139, 2
      %v1141 = vadd.f32 %v1139, %v1140
      %v1142 = vrot.slane %v1141, 1
      %v1143 = vadd.f32 %v1141, %v1142
      %1145 = vrot.lane.b32.xlu0 %v1137, 120
      %v1146 = vpop.permute.xlu0 %1145
      %v1148 = vadd.f32 %v1137, %v1146
      %1150 = vrot.lane.b32.xlu0 %v1143, 120
      %v1151 = vpop.permute.xlu0 %1150
      %v1153 = vadd.f32 %v1143, %v1151
      %1154 = vrot.lane.b32.xlu0 %v1137, 112
      %v1155 = vpop.permute.xlu0 %1154
      %v1157 = vadd.f32 %v1148, %v1155
      %1158 = vrot.lane.b32.xlu0 %v1143, 112
      %v1159 = vpop.permute.xlu0 %1158
      %v1161 = vadd.f32 %v1153, %v1159
      %1162 = vrot.lane.b32.xlu0 %v1137, 104
      %v1163 = vpop.permute.xlu0 %1162
      %v1165 = vadd.f32 %v1157, %v1163
      %1166 = vrot.lane.b32.xlu0 %v1143, 104
      %v1167 = vpop.permute.xlu0 %1166
      %v1169 = vadd.f32 %v1161, %v1167
      %1170 = vrot.lane.b32.xlu0 %v1137, 96
      %v1171 = vpop.permute.xlu0 %1170
      %v1173 = vadd.f32 %v1165, %v1171
      %1174 = vrot.lane.b32.xlu0 %v1143, 96
      %v1175 = vpop.permute.xlu0 %1174
      %v1177 = vadd.f32 %v1169, %v1175
      %1178 = vrot.lane.b32.xlu0 %v1137, 88
      %v1179 = vpop.permute.xlu0 %1178
      %v1181 = vadd.f32 %v1173, %v1179
      %1182 = vrot.lane.b32.xlu0 %v1143, 88
      %v1183 = vpop.permute.xlu0 %1182
      %v1185 = vadd.f32 %v1177, %v1183
      %1186 = vrot.lane.b32.xlu0 %v1137, 80
      %v1187 = vpop.permute.xlu0 %1186
      %v1189 = vadd.f32 %v1181, %v1187
      %1190 = vrot.lane.b32.xlu0 %v1143, 80
      %v1191 = vpop.permute.xlu0 %1190
      %v1193 = vadd.f32 %v1185, %v1191
      %1194 = vrot.lane.b32.xlu0 %v1137, 72
      %v1195 = vpop.permute.xlu0 %1194
      %v1197 = vadd.f32 %v1189, %v1195
      %1198 = vrot.lane.b32.xlu0 %v1143, 72
      %v1199 = vpop.permute.xlu0 %1198
      %v1201 = vadd.f32 %v1193, %v1199
      %v1202 = vmul.f32 %v1197, %v1030
      %v1203 = vmul.f32 %v1201, %v1030
      %v1204 = vmul.f32 %v1202, %v1202
      %v1205 = vsub.f32 %v1203, %v1204
      %v1206 = vmax.f32 %v1205, 0.0
      %v1207 = vadd.f32 %v1206, 1e-05
      %v1208 = vrsqrt.pop %v1207
      %v1209 = vsub.f32 0.0, %v1202
      %v1210 = vmul.f32 %v1209, %v1208
      %1212 = vrot.lane.b32.xlu0 %v1208, 120
      %v1213 = vpop.permute.xlu0 %1212
      %1215 = vrot.lane.b32.xlu0 %v1208, 8
      %v1216 = vpop.permute.xlu0 %1215
      %1218 = vrot.lane.b32.xlu0 %v1208, 16
      %v1219 = vpop.permute.xlu0 %1218
      %1221 = vrot.lane.b32.xlu0 %v1208, 24
      %v1222 = vpop.permute.xlu0 %1221
      %1224 = vrot.lane.b32.xlu0 %v1208, 32
      %v1225 = vpop.permute.xlu0 %1224
      %1227 = vrot.lane.b32.xlu0 %v1208, 40
      %v1228 = vpop.permute.xlu0 %1227
      %1230 = vrot.lane.b32.xlu0 %v1208, 48
      %v1231 = vpop.permute.xlu0 %1230
      %1233 = vrot.lane.b32.xlu0 %v1208, 56
      %v1234 = vpop.permute.xlu0 %1233
      %1236 = vrot.lane.b32.xlu0 %v1208, 64
      %v1237 = vpop.permute.xlu0 %1236
      %v1239 = vsel %vm1068, %v1213, %v1208
      %v1240 = vsel %vm1070, %v1239, %v1216
      %v1241 = vsel %vm1072, %v1240, %v1219
      %v1242 = vsel %vm1074, %v1241, %v1222
      %v1243 = vsel %vm1076, %v1242, %v1225
      %v1244 = vsel %vm1078, %v1243, %v1228
      %v1245 = vsel %vm1080, %v1244, %v1231
      %v1246 = vsel %vm1082, %v1245, %v1234
      %v1247 = vsel %vm1084, %v1246, %v1237
      %v1248 = vsel %vm1086, %v1247, 0.0
      %1250 = vrot.lane.b32.xlu0 %v1210, 8
      %v1251 = vpop.permute.xlu0 %1250
      %1253 = vrot.lane.b32.xlu0 %v1210, 16
      %v1254 = vpop.permute.xlu0 %1253
      %1256 = vrot.lane.b32.xlu0 %v1210, 24
      %v1257 = vpop.permute.xlu0 %1256
      %1259 = vrot.lane.b32.xlu0 %v1210, 32
      %v1260 = vpop.permute.xlu0 %1259
      %1262 = vrot.lane.b32.xlu0 %v1210, 40
      %v1263 = vpop.permute.xlu0 %1262
      %1265 = vrot.lane.b32.xlu0 %v1210, 48
      %v1266 = vpop.permute.xlu0 %1265
      %1268 = vrot.lane.b32.xlu0 %v1210, 56
      %v1269 = vpop.permute.xlu0 %1268
      %v1271 = vsel %vm1068, 0.0, %v1210
      %v1272 = vsel %vm1070, %v1271, %v1251
      %v1273 = vsel %vm1072, %v1272, %v1254
      %v1274 = vsel %vm1074, %v1273, %v1257
      %v1275 = vsel %vm1076, %v1274, %v1260
      %v1276 = vsel %vm1078, %v1275, %v1263
      %v1277 = vsel %vm1080, %v1276, %v1266
      %v1278 = vsel %vm1082, %v1277, %v1269
      %v1279 = vsel %vm1084, %v1278, 0.0
      %v1280 = vsel %vm1086, %v1279, 0.0
      %v1281 = vlaneseq
      %v1282 = vshrl.u32 %v1281, 7
      %v1283 = vsub.s32 0, %v1282
      %v1284 = vrot.slane %v1248, %v1283
      %v1285 = vmul.f32 %v951, %v1284
      %v1286 = vlaneseq
      %v1287 = vshrl.u32 %v1286, 7
      %v1288 = vsub.s32 0, %v1287
      %v1289 = vrot.slane %v1280, %v1288
      %v1290 = vadd.f32 %v1285, %v1289
      %v1291 = vmax.f32 %v1290, 0.0
      %1292 = vst [vmem:[#allocation2 + $0x11] sm:$0xff] %v1291
      %v1293 = vld [vmem:[#allocation2] ss:$2 sm:$0xf]
      %s1294 = scalar_lea.vmem [#allocation2], 1
      %v1295 = vld [vmem:[%s1294] ss:$2 sm:$0xf]
      %s1296 = scalar_lea.vmem [#allocation2], 2
      %v1297 = vld [vmem:[%s1296] ss:$2 sm:$0xf]
      %s1298 = scalar_lea.vmem [#allocation2], 3
      %v1299 = vld [vmem:[%s1298] ss:$2 sm:$0xf]
      %s1300 = scalar_lea.vmem [#allocation2], 16
      %v1301 = vld [vmem:[%s1300] ss:$2 sm:$0xf]
      %s1302 = scalar_lea.vmem [#allocation2], 17
      %v1303 = vld [vmem:[%s1302] ss:$2 sm:$0xf]
      %s1304 = scalar_lea.vmem [#allocation2], 18
      %v1305 = vld [vmem:[%s1304] ss:$2 sm:$0xf]
      %s1306 = scalar_lea.vmem [#allocation2], 19
      %v1307 = vld [vmem:[%s1306] ss:$2 sm:$0xf]
      %v1312 = vrot.slane %v1301, 4
      %v1313 = vrot.slane %v1303, 4
      %v1314 = vrot.slane %v1305, 4
      %v1315 = vrot.slane %v1307, 4
      %vm1320 = vcmask 1043456
      %v1321 = vsel %vm1320, %v1293, %v1312
      %v1322 = vsel %vm1320, %v1295, %v1313
      %v1323 = vsel %vm1320, %v1297, %v1314
      %v1324 = vsel %vm1320, %v1299, %v1315
      %v1325 = vpack.c.bf16 %v1321, %v1321
      %v1326 = vpack.c.bf16 %v1322, %v1322
      %v1327 = vpack.c.bf16 %v1323, %v1323
      %v1328 = vpack.c.bf16 %v1324, %v1324
      %v1329 = vld [vmem:[%s6] sm:$0xf]
      %v1330 = vld [vmem:[%s6 + $0x4] sm:$0xf]
      %v1331 = vld [vmem:[%s6 + $0x8] sm:$0xf]
      %v1332 = vld [vmem:[%s6 + $0xc] sm:$0xf]
      %v1333 = vld [vmem:[%s6 + $0x10] sm:$0xf]
      %v1334 = vld [vmem:[%s6 + $0x14] sm:$0xf]
      %v1335 = vld [vmem:[%s6 + $0x18] sm:$0xf]
      %v1336 = vld [vmem:[%s6 + $0x1c] sm:$0xf]
      %v1337 = vld [vmem:[%s6 + $0x20] sm:$0xf]
      %v1338 = vld [vmem:[%s6 + $0x24] sm:$0xf]
      %v1339 = vld [vmem:[%s6 + $0x28] sm:$0xf]
      %v1340 = vld [vmem:[%s6 + $0x2c] sm:$0xf]
      %v1341 = vld [vmem:[%s6 + $0x30] sm:$0xf]
      %v1342 = vld [vmem:[%s6 + $0x34] sm:$0xf]
      %v1343 = vld [vmem:[%s6 + $0x38] sm:$0xf]
      %v1344 = vld [vmem:[%s6 + $0x3c] sm:$0xf]
      %v1345 = vld [vmem:[%s6 + $0x40] sm:$0xf]
      %v1346 = vld [vmem:[%s6 + $0x44] sm:$0xf]
      %v1347 = vld [vmem:[%s6 + $0x48] sm:$0xf]
      %v1348 = vld [vmem:[%s6 + $0x4c] sm:$0xf]
      %v1349 = vld [vmem:[%s6 + $0x50] sm:$0xf]
      %v1350 = vld [vmem:[%s6 + $0x54] sm:$0xf]
      %v1351 = vld [vmem:[%s6 + $0x58] sm:$0xf]
      %v1352 = vld [vmem:[%s6 + $0x5c] sm:$0xf]
      %v1353 = vld [vmem:[%s6 + $0x60] sm:$0xf]
      %v1354 = vld [vmem:[%s6 + $0x64] sm:$0xf]
      %v1355 = vld [vmem:[%s6 + $0x68] sm:$0xf]
      %v1356 = vld [vmem:[%s6 + $0x6c] sm:$0xf]
      %v1357 = vld [vmem:[%s6 + $0x70] sm:$0xf]
      %v1358 = vld [vmem:[%s6 + $0x74] sm:$0xf]
      %v1359 = vld [vmem:[%s6 + $0x78] sm:$0xf]
      %v1360 = vld [vmem:[%s6 + $0x7c] sm:$0xf]
      %v1361 = vld [vmem:[%s6 + $0x80] sm:$0xf]
      %v1362 = vld [vmem:[%s6 + $0x84] sm:$0xf]
      %v1363 = vld [vmem:[%s6 + $0x88] sm:$0xf]
      %v1364 = vld [vmem:[%s6 + $0x8c] sm:$0xf]
      %v1365 = vld [vmem:[%s6 + $0x90] sm:$0xf]
      %v1366 = vld [vmem:[%s6 + $0x94] sm:$0xf]
      %v1367 = vld [vmem:[%s6 + $0x98] sm:$0xf]
      %v1368 = vld [vmem:[%s6 + $0x9c] sm:$0xf]
      %v1369 = vld [vmem:[%s6 + $0xa0] sm:$0xf]
      %v1370 = vld [vmem:[%s6 + $0xa4] sm:$0xf]
      %v1371 = vld [vmem:[%s6 + $0xa8] sm:$0xf]
      %v1372 = vld [vmem:[%s6 + $0xac] sm:$0xf]
      %v1373 = vld [vmem:[%s6 + $0xb0] sm:$0xf]
      %v1374 = vld [vmem:[%s6 + $0xb4] sm:$0xf]
      %v1375 = vld [vmem:[%s6 + $0xb8] sm:$0xf]
      %v1376 = vld [vmem:[%s6 + $0xbc] sm:$0xf]
      %v1377 = vld [vmem:[%s6 + $0xc0] sm:$0xf]
      %v1378 = vld [vmem:[%s6 + $0xc4] sm:$0xf]
      %v1379 = vld [vmem:[%s6 + $0xc8] sm:$0xf]
      %v1380 = vld [vmem:[%s6 + $0xcc] sm:$0xf]
      %v1381 = vld [vmem:[%s6 + $0xd0] sm:$0xf]
      %v1382 = vld [vmem:[%s6 + $0xd4] sm:$0xf]
      %v1383 = vld [vmem:[%s6 + $0xd8] sm:$0xf]
      %v1384 = vld [vmem:[%s6 + $0xdc] sm:$0xf]
      %v1385 = vld [vmem:[%s6 + $0xe0] sm:$0xf]
      %v1386 = vld [vmem:[%s6 + $0xe4] sm:$0xf]
      %v1387 = vld [vmem:[%s6 + $0xe8] sm:$0xf]
      %v1388 = vld [vmem:[%s6 + $0xec] sm:$0xf]
      %v1389 = vld [vmem:[%s6 + $0xf0] sm:$0xf]
      %v1390 = vld [vmem:[%s6 + $0xf4] sm:$0xf]
      %v1391 = vld [vmem:[%s6 + $0xf8] sm:$0xf]
      %v1392 = vld [vmem:[%s6 + $0xfc] sm:$0xf]
      %v1457 = vunpack.c.l.b16 %v1329
      %v1458 = vunpack.c.l.b16 %v1330
      %v1459 = vunpack.c.l.b16 %v1331
      %v1460 = vunpack.c.l.b16 %v1332
      %v1461 = vunpack.c.l.b16 %v1333
      %v1462 = vunpack.c.l.b16 %v1334
      %v1463 = vunpack.c.l.b16 %v1335
      %v1464 = vunpack.c.l.b16 %v1336
      %v1465 = vunpack.c.l.b16 %v1337
      %v1466 = vunpack.c.l.b16 %v1338
      %v1467 = vunpack.c.l.b16 %v1339
      %v1468 = vunpack.c.l.b16 %v1340
      %v1469 = vunpack.c.l.b16 %v1341
      %v1470 = vunpack.c.l.b16 %v1342
      %v1471 = vunpack.c.l.b16 %v1343
      %v1472 = vunpack.c.l.b16 %v1344
      %v1473 = vunpack.c.l.b16 %v1345
      %v1474 = vunpack.c.l.b16 %v1346
      %v1475 = vunpack.c.l.b16 %v1347
      %v1476 = vunpack.c.l.b16 %v1348
      %v1477 = vunpack.c.l.b16 %v1349
      %v1478 = vunpack.c.l.b16 %v1350
      %v1479 = vunpack.c.l.b16 %v1351
      %v1480 = vunpack.c.l.b16 %v1352
      %v1481 = vunpack.c.l.b16 %v1353
      %v1482 = vunpack.c.l.b16 %v1354
      %v1483 = vunpack.c.l.b16 %v1355
      %v1484 = vunpack.c.l.b16 %v1356
      %v1485 = vunpack.c.l.b16 %v1357
      %v1486 = vunpack.c.l.b16 %v1358
      %v1487 = vunpack.c.l.b16 %v1359
      %v1488 = vunpack.c.l.b16 %v1360
      %v1489 = vunpack.c.l.b16 %v1361
      %v1490 = vunpack.c.l.b16 %v1362
      %v1491 = vunpack.c.l.b16 %v1363
      %v1492 = vunpack.c.l.b16 %v1364
      %v1493 = vunpack.c.l.b16 %v1365
      %v1494 = vunpack.c.l.b16 %v1366
      %v1495 = vunpack.c.l.b16 %v1367
      %v1496 = vunpack.c.l.b16 %v1368
      %v1497 = vunpack.c.l.b16 %v1369
      %v1498 = vunpack.c.l.b16 %v1370
      %v1499 = vunpack.c.l.b16 %v1371
      %v1500 = vunpack.c.l.b16 %v1372
      %v1501 = vunpack.c.l.b16 %v1373
      %v1502 = vunpack.c.l.b16 %v1374
      %v1503 = vunpack.c.l.b16 %v1375
      %v1504 = vunpack.c.l.b16 %v1376
      %v1505 = vunpack.c.l.b16 %v1377
      %v1506 = vunpack.c.l.b16 %v1378
      %v1507 = vunpack.c.l.b16 %v1379
      %v1508 = vunpack.c.l.b16 %v1380
      %v1509 = vunpack.c.l.b16 %v1381
      %v1510 = vunpack.c.l.b16 %v1382
      %v1511 = vunpack.c.l.b16 %v1383
      %v1512 = vunpack.c.l.b16 %v1384
      %v1513 = vunpack.c.l.b16 %v1385
      %v1514 = vunpack.c.l.b16 %v1386
      %v1515 = vunpack.c.l.b16 %v1387
      %v1516 = vunpack.c.l.b16 %v1388
      %v1517 = vunpack.c.l.b16 %v1389
      %v1518 = vunpack.c.l.b16 %v1390
      %v1519 = vunpack.c.l.b16 %v1391
      %v1520 = vunpack.c.l.b16 %v1392
      %v1521 = vpack.c.b16 %v1458, %v1457
      %v1522 = vpack.c.b16 %v1460, %v1459
      %v1523 = vpack.c.b16 %v1462, %v1461
      %v1524 = vpack.c.b16 %v1464, %v1463
      %v1525 = vpack.c.b16 %v1466, %v1465
      %v1526 = vpack.c.b16 %v1468, %v1467
      %v1527 = vpack.c.b16 %v1470, %v1469
      %v1528 = vpack.c.b16 %v1472, %v1471
      %v1529 = vpack.c.b16 %v1474, %v1473
      %v1530 = vpack.c.b16 %v1476, %v1475
      %v1531 = vpack.c.b16 %v1478, %v1477
      %v1532 = vpack.c.b16 %v1480, %v1479
      %v1533 = vpack.c.b16 %v1482, %v1481
      %v1534 = vpack.c.b16 %v1484, %v1483
      %v1535 = vpack.c.b16 %v1486, %v1485
      %v1536 = vpack.c.b16 %v1488, %v1487
      %v1537 = vpack.c.b16 %v1490, %v1489
      %v1538 = vpack.c.b16 %v1492, %v1491
      %v1539 = vpack.c.b16 %v1494, %v1493
      %v1540 = vpack.c.b16 %v1496, %v1495
      %v1541 = vpack.c.b16 %v1498, %v1497
      %v1542 = vpack.c.b16 %v1500, %v1499
      %v1543 = vpack.c.b16 %v1502, %v1501
      %v1544 = vpack.c.b16 %v1504, %v1503
      %v1545 = vpack.c.b16 %v1506, %v1505
      %v1546 = vpack.c.b16 %v1508, %v1507
      %v1547 = vpack.c.b16 %v1510, %v1509
      %v1548 = vpack.c.b16 %v1512, %v1511
      %v1549 = vpack.c.b16 %v1514, %v1513
      %v1550 = vpack.c.b16 %v1516, %v1515
      %v1551 = vpack.c.b16 %v1518, %v1517
      %v1552 = vpack.c.b16 %v1520, %v1519
      %1585 = vmatprep.subr.bf16.mxu0 0
      %1586 = vmatpush1.bf16.msra.mxu0 %v1528
      %1587 = vmatprep.subr.bf16.mxu0 0
      %1588 = vmatpush1.bf16.msra.mxu0 %v1527
      %1589 = vmatprep.subr.bf16.mxu0 0
      %1590 = vmatpush1.bf16.msra.mxu0 %v1526
      %1591 = vmatprep.subr.bf16.mxu0 0
      %1592 = vmatpush1.bf16.msra.mxu0 %v1525
      %1593 = vmatprep.subr.bf16.mxu0 0
      %1594 = vmatpush1.bf16.msra.mxu0 %v1524
      %1595 = vmatprep.subr.bf16.mxu0 0
      %1596 = vmatpush1.bf16.msra.mxu0 %v1523
      %1597 = vmatprep.subr.bf16.mxu0 0
      %1598 = vmatpush1.bf16.msra.mxu0 %v1522
      %1599 = vmatprep.subr.bf16.mxu0 0
      %1600 = vmatpush1.bf16.msra.mxu0 %v1521
      %1601 = vmatprep.subr.bf16.mxu0 0
      %1602 = vmatpush2.bf16.msra.mxu0 %v1536
      %1603 = vmatprep.subr.bf16.mxu0 0
      %1604 = vmatpush2.bf16.msra.mxu0 %v1535
      %1605 = vmatprep.subr.bf16.mxu0 0
      %1606 = vmatpush2.bf16.msra.mxu0 %v1534
      %1607 = vmatprep.subr.bf16.mxu0 0
      %1608 = vmatpush2.bf16.msra.mxu0 %v1533
      %1609 = vmatprep.subr.bf16.mxu0 0
      %1610 = vmatpush2.bf16.msra.mxu0 %v1532
      %1611 = vmatprep.subr.bf16.mxu0 0
      %1612 = vmatpush2.bf16.msra.mxu0 %v1531
      %1613 = vmatprep.subr.bf16.mxu0 0
      %1614 = vmatpush2.bf16.msra.mxu0 %v1530
      %1615 = vmatprep.subr.bf16.mxu0 0
      %1616 = vmatpush2.bf16.msra.mxu0 %v1529
      %1617 = vmatprep.mubr.bf16.mxu0 %v1326
      %1618 = vmatmul.mubr.bf16.gmra.mxu0 %v1325
      %v1619 = vpop.f32.mrf.mxu0
      %v1620 = vadd.f32 0.0, %v1619
      %v1621 = vpop.f32.mrf.mxu0
      %v1622 = vpop.f32.mrf.mxu0
      %v1623 = vpop.f32.mrf.mxu0
      %1624 = vdwg.mxu0
      %1625 = vmatprep.subr.bf16.mxu0 0
      %1626 = vmatpush1.bf16.msra.mxu0 %v1544
      %1627 = vmatprep.subr.bf16.mxu0 0
      %1628 = vmatpush1.bf16.msra.mxu0 %v1543
      %1629 = vmatprep.subr.bf16.mxu0 0
      %1630 = vmatpush1.bf16.msra.mxu0 %v1542
      %1631 = vmatprep.subr.bf16.mxu0 0
      %1632 = vmatpush1.bf16.msra.mxu0 %v1541
      %1633 = vmatprep.subr.bf16.mxu0 0
      %1634 = vmatpush1.bf16.msra.mxu0 %v1540
      %1635 = vmatprep.subr.bf16.mxu0 0
      %1636 = vmatpush1.bf16.msra.mxu0 %v1539
      %1637 = vmatprep.subr.bf16.mxu0 0
      %1638 = vmatpush1.bf16.msra.mxu0 %v1538
      %1639 = vmatprep.subr.bf16.mxu0 0
      %1640 = vmatpush1.bf16.msra.mxu0 %v1537
      %1641 = vmatprep.subr.bf16.mxu0 0
      %1642 = vmatpush2.bf16.msra.mxu0 %v1552
      %1643 = vmatprep.subr.bf16.mxu0 0
      %1644 = vmatpush2.bf16.msra.mxu0 %v1551
      %1645 = vmatprep.subr.bf16.mxu0 0
      %1646 = vmatpush2.bf16.msra.mxu0 %v1550
      %1647 = vmatprep.subr.bf16.mxu0 0
      %1648 = vmatpush2.bf16.msra.mxu0 %v1549
      %1649 = vmatprep.subr.bf16.mxu0 0
      %1650 = vmatpush2.bf16.msra.mxu0 %v1548
      %1651 = vmatprep.subr.bf16.mxu0 0
      %1652 = vmatpush2.bf16.msra.mxu0 %v1547
      %1653 = vmatprep.subr.bf16.mxu0 0
      %1654 = vmatpush2.bf16.msra.mxu0 %v1546
      %1655 = vmatprep.subr.bf16.mxu0 0
      %1656 = vmatpush2.bf16.msra.mxu0 %v1545
      %1657 = vmatprep.mubr.bf16.mxu0 %v1328
      %1658 = vmatmul.mubr.bf16.gmra.mxu0 %v1327
      %v1659 = vpop.f32.mrf.mxu0
      %v1660 = vadd.f32 %v1620, %v1659
      %v1661 = vpop.f32.mrf.mxu0
      %v1662 = vpop.f32.mrf.mxu0
      %v1663 = vpop.f32.mrf.mxu0
      %1664 = vdwg.mxu0
      %v1665 = vmul.f32 %v1660, %v1660
      %v1666 = vsel %vm1320, %v1660, 0.0
      %v1667 = vrot.slane %v1666, 4
      %v1668 = vadd.f32 %v1666, %v1667
      %v1669 = vrot.slane %v1668, 2
      %v1670 = vadd.f32 %v1668, %v1669
      %v1671 = vrot.slane %v1670, 1
      %v1672 = vadd.f32 %v1670, %v1671
      %v1673 = vsel %vm1320, %v1665, 0.0
      %v1674 = vrot.slane %v1673, 4
      %v1675 = vadd.f32 %v1673, %v1674
      %v1676 = vrot.slane %v1675, 2
      %v1677 = vadd.f32 %v1675, %v1676
      %v1678 = vrot.slane %v1677, 1
      %v1679 = vadd.f32 %v1677, %v1678
      %1681 = vrot.lane.b32.xlu0 %v1672, 112
      %v1682 = vpop.permute.xlu0 %1681
      %v1684 = vadd.f32 %v1672, %v1682
      %1686 = vrot.lane.b32.xlu0 %v1679, 112
      %v1687 = vpop.permute.xlu0 %1686
      %v1689 = vadd.f32 %v1679, %v1687
      %1690 = vrot.lane.b32.xlu0 %v1672, 96
      %v1691 = vpop.permute.xlu0 %1690
      %v1693 = vadd.f32 %v1684, %v1691
      %1694 = vrot.lane.b32.xlu0 %v1679, 96
      %v1695 = vpop.permute.xlu0 %1694
      %v1697 = vadd.f32 %v1689, %v1695
      %1698 = vrot.lane.b32.xlu0 %v1672, 80
      %v1699 = vpop.permute.xlu0 %1698
      %v1701 = vadd.f32 %v1693, %v1699
      %1702 = vrot.lane.b32.xlu0 %v1679, 80
      %v1703 = vpop.permute.xlu0 %1702
      %v1705 = vadd.f32 %v1697, %v1703
      %v1706 = vrcp.pop 16.0
      %v1707 = vmul.f32 %v1701, %v1706
      %v1708 = vmul.f32 %v1705, %v1706
      %v1709 = vmul.f32 %v1707, %v1707
      %v1710 = vsub.f32 %v1708, %v1709
      %v1711 = vmax.f32 %v1710, 0.0
      %v1712 = vadd.f32 %v1711, 1e-05
      %v1713 = vrsqrt.pop %v1712
      %v1714 = vsub.f32 0.0, %v1707
      %v1715 = vmul.f32 %v1714, %v1713
      %1717 = vrot.lane.b32.xlu0 %v1713, 16
      %v1718 = vpop.permute.xlu0 %1717
      %1720 = vrot.lane.b32.xlu0 %v1713, 32
      %v1721 = vpop.permute.xlu0 %1720
      %1723 = vrot.lane.b32.xlu0 %v1713, 48
      %v1724 = vpop.permute.xlu0 %1723
      %v1726 = vsel %vm1070, %v1713, %v1718
      %v1727 = vsel %vm1074, %v1726, %v1721
      %v1728 = vsel %vm1078, %v1727, %v1724
      %v1729 = vsel %vm1082, %v1728, 0.0
      %1731 = vrot.lane.b32.xlu0 %v1715, 16
      %v1732 = vpop.permute.xlu0 %1731
      %1734 = vrot.lane.b32.xlu0 %v1715, 32
      %v1735 = vpop.permute.xlu0 %1734
      %1737 = vrot.lane.b32.xlu0 %v1715, 48
      %v1738 = vpop.permute.xlu0 %1737
      %v1740 = vsel %vm1070, %v1715, %v1732
      %v1741 = vsel %vm1074, %v1740, %v1735
      %v1742 = vsel %vm1078, %v1741, %v1738
      %v1743 = vsel %vm1082, %v1742, 0.0
      %v1744 = vlaneseq
      %v1745 = vshrl.u32 %v1744, 7
      %v1746 = vsub.s32 0, %v1745
      %v1747 = vrot.slane %v1729, %v1746
      %v1748 = vmul.f32 %v1660, %v1747
      %v1749 = vlaneseq
      %v1750 = vshrl.u32 %v1749, 7
      %v1751 = vsub.s32 0, %v1750
      %v1752 = vrot.slane %v1743, %v1751
      %v1753 = vadd.f32 %v1748, %v1752
      %v1754 = vmax.f32 %v1753, 0.0
      %v1756 = vrot.slane %v1660, 4
      %v1758 = vsel %vm1320, %v1756, 0.0
      %v1759 = vrot.slane %v1758, 4
      %v1760 = vadd.f32 %v1758, %v1759
      %v1761 = vrot.slane %v1760, 2
      %v1762 = vadd.f32 %v1760, %v1761
      %v1763 = vrot.slane %v1762, 1
      %v1764 = vadd.f32 %v1762, %v1763
      %v1766 = vrot.slane %v1665, 4
      %v1768 = vsel %vm1320, %v1766, 0.0
      %v1769 = vrot.slane %v1768, 4
      %v1770 = vadd.f32 %v1768, %v1769
      %v1771 = vrot.slane %v1770, 2
      %v1772 = vadd.f32 %v1770, %v1771
      %v1773 = vrot.slane %v1772, 1
      %v1774 = vadd.f32 %v1772, %v1773
      %1776 = vrot.lane.b32.xlu0 %v1764, 112
      %v1777 = vpop.permute.xlu0 %1776
      %v1779 = vadd.f32 %v1764, %v1777
      %1781 = vrot.lane.b32.xlu0 %v1774, 112
      %v1782 = vpop.permute.xlu0 %1781
      %v1784 = vadd.f32 %v1774, %v1782
      %1785 = vrot.lane.b32.xlu0 %v1764, 96
      %v1786 = vpop.permute.xlu0 %1785
      %v1788 = vadd.f32 %v1779, %v1786
      %1789 = vrot.lane.b32.xlu0 %v1774, 96
      %v1790 = vpop.permute.xlu0 %1789
      %v1792 = vadd.f32 %v1784, %v1790
      %1793 = vrot.lane.b32.xlu0 %v1764, 80
      %v1794 = vpop.permute.xlu0 %1793
      %v1796 = vadd.f32 %v1788, %v1794
      %1797 = vrot.lane.b32.xlu0 %v1774, 80
      %v1798 = vpop.permute.xlu0 %1797
      %v1800 = vadd.f32 %v1792, %v1798
      %v1801 = vmul.f32 %v1796, %v1706
      %v1802 = vmul.f32 %v1800, %v1706
      %v1803 = vmul.f32 %v1801, %v1801
      %v1804 = vsub.f32 %v1802, %v1803
      %v1805 = vmax.f32 %v1804, 0.0
      %v1806 = vadd.f32 %v1805, 1e-05
      %v1807 = vrsqrt.pop %v1806
      %v1808 = vsub.f32 0.0, %v1801
      %v1809 = vmul.f32 %v1808, %v1807
      %1811 = vrot.lane.b32.xlu0 %v1807, 16
      %v1812 = vpop.permute.xlu0 %1811
      %1814 = vrot.lane.b32.xlu0 %v1807, 32
      %v1815 = vpop.permute.xlu0 %1814
      %1817 = vrot.lane.b32.xlu0 %v1807, 48
      %v1818 = vpop.permute.xlu0 %1817
      %v1820 = vsel %vm1070, %v1807, %v1812
      %v1821 = vsel %vm1074, %v1820, %v1815
      %v1822 = vsel %vm1078, %v1821, %v1818
      %v1823 = vsel %vm1082, %v1822, 0.0
      %1825 = vrot.lane.b32.xlu0 %v1809, 16
      %v1826 = vpop.permute.xlu0 %1825
      %1828 = vrot.lane.b32.xlu0 %v1809, 32
      %v1829 = vpop.permute.xlu0 %1828
      %1831 = vrot.lane.b32.xlu0 %v1809, 48
      %v1832 = vpop.permute.xlu0 %1831
      %v1834 = vsel %vm1070, %v1809, %v1826
      %v1835 = vsel %vm1074, %v1834, %v1829
      %v1836 = vsel %vm1078, %v1835, %v1832
      %v1837 = vsel %vm1082, %v1836, 0.0
      %v1838 = vlaneseq
      %v1839 = vshrl.u32 %v1838, 7
      %v1840 = vsub.s32 0, %v1839
      %v1841 = vrot.slane %v1823, %v1840
      %v1842 = vmul.f32 %v1660, %v1841
      %v1843 = vlaneseq
      %v1844 = vshrl.u32 %v1843, 7
      %v1845 = vsub.s32 0, %v1844
      %v1846 = vrot.slane %v1837, %v1845
      %v1847 = vadd.f32 %v1842, %v1846
      %v1848 = vmax.f32 %v1847, 0.0
      %v1849 = vsel %vm1320, %v1754, %v1848
      %v1850 = vpack.c.bf16 %v1849, %v1849
      %v1851 = vld [vmem:[%s7] sm:$0xf]
      %v1852 = vld [vmem:[%s7 + $0x4] sm:$0xf]
      %v1853 = vld [vmem:[%s7 + $0x8] sm:$0xf]
      %v1854 = vld [vmem:[%s7 + $0xc] sm:$0xf]
      %v1855 = vld [vmem:[%s7 + $0x10] sm:$0xf]
      %v1856 = vld [vmem:[%s7 + $0x14] sm:$0xf]
      %v1857 = vld [vmem:[%s7 + $0x18] sm:$0xf]
      %v1858 = vld [vmem:[%s7 + $0x1c] sm:$0xf]
      %v1859 = vld [vmem:[%s7 + $0x20] sm:$0xf]
      %v1860 = vld [vmem:[%s7 + $0x24] sm:$0xf]
      %v1861 = vld [vmem:[%s7 + $0x28] sm:$0xf]
      %v1862 = vld [vmem:[%s7 + $0x2c] sm:$0xf]
      %v1863 = vld [vmem:[%s7 + $0x30] sm:$0xf]
      %v1864 = vld [vmem:[%s7 + $0x34] sm:$0xf]
      %v1865 = vld [vmem:[%s7 + $0x38] sm:$0xf]
      %v1866 = vld [vmem:[%s7 + $0x3c] sm:$0xf]
      %v1883 = vunpack.c.l.b16 %v1851
      %v1884 = vunpack.c.l.b16 %v1852
      %v1885 = vunpack.c.l.b16 %v1853
      %v1886 = vunpack.c.l.b16 %v1854
      %v1887 = vunpack.c.l.b16 %v1855
      %v1888 = vunpack.c.l.b16 %v1856
      %v1889 = vunpack.c.l.b16 %v1857
      %v1890 = vunpack.c.l.b16 %v1858
      %v1891 = vunpack.c.l.b16 %v1859
      %v1892 = vunpack.c.l.b16 %v1860
      %v1893 = vunpack.c.l.b16 %v1861
      %v1894 = vunpack.c.l.b16 %v1862
      %v1895 = vunpack.c.l.b16 %v1863
      %v1896 = vunpack.c.l.b16 %v1864
      %v1897 = vunpack.c.l.b16 %v1865
      %v1898 = vunpack.c.l.b16 %v1866
      %v1899 = vpack.c.b16 %v1884, %v1883
      %v1900 = vpack.c.b16 %v1886, %v1885
      %v1901 = vpack.c.b16 %v1888, %v1887
      %v1902 = vpack.c.b16 %v1890, %v1889
      %v1903 = vpack.c.b16 %v1892, %v1891
      %v1904 = vpack.c.b16 %v1894, %v1893
      %v1905 = vpack.c.b16 %v1896, %v1895
      %v1906 = vpack.c.b16 %v1898, %v1897
      %1915 = vmatprep.subr.bf16.mxu0 0
      %1916 = vmatpush1.bf16.msra.mxu0 %v1906
      %1917 = vmatprep.subr.bf16.mxu0 0
      %1918 = vmatpush1.bf16.msra.mxu0 %v1905
      %1919 = vmatprep.subr.bf16.mxu0 0
      %1920 = vmatpush1.bf16.msra.mxu0 %v1904
      %1921 = vmatprep.subr.bf16.mxu0 0
      %1922 = vmatpush1.bf16.msra.mxu0 %v1903
      %1923 = vmatprep.subr.bf16.mxu0 0
      %1924 = vmatpush1.bf16.msra.mxu0 %v1902
      %1925 = vmatprep.subr.bf16.mxu0 0
      %1926 = vmatpush1.bf16.msra.mxu0 %v1901
      %1927 = vmatprep.subr.bf16.mxu0 0
      %1928 = vmatpush1.bf16.msra.mxu0 %v1900
      %1929 = vmatprep.subr.bf16.mxu0 0
      %1930 = vmatpush1.bf16.msra.mxu0 %v1899
      %1931 = vmatprep.subr.bf16.mxu0 0
      %1932 = vmatpush2.bf16.msra.mxu0 0
      %1933 = vmatprep.subr.bf16.mxu0 0
      %1934 = vmatpush2.bf16.msra.mxu0 0
      %1935 = vmatprep.subr.bf16.mxu0 0
      %1936 = vmatpush2.bf16.msra.mxu0 0
      %1937 = vmatprep.subr.bf16.mxu0 0
      %1938 = vmatpush2.bf16.msra.mxu0 0
      %1939 = vmatprep.subr.bf16.mxu0 0
      %1940 = vmatpush2.bf16.msra.mxu0 0
      %1941 = vmatprep.subr.bf16.mxu0 0
      %1942 = vmatpush2.bf16.msra.mxu0 0
      %1943 = vmatprep.subr.bf16.mxu0 0
      %1944 = vmatpush2.bf16.msra.mxu0 0
      %1945 = vmatprep.subr.bf16.mxu0 0
      %1946 = vmatpush2.bf16.msra.mxu0 0
      %1947 = vmatprep.mubr.bf16.mxu0 0
      %1948 = vmatmul.mubr.bf16.gmra.mxu0 %v1850
      %v1949 = vpop.f32.mrf.mxu0
      %v1950 = vadd.f32 0.0, %v1949
      %v1951 = vpop.f32.mrf.mxu0
      %v1952 = vpop.f32.mrf.mxu0
      %v1953 = vpop.f32.mrf.mxu0
      %1954 = vdwg.mxu0
      %v1955 = vld [vmem:[%s8] sm:$0xf]
      %1957 = vrot.lane.b32.xlu0 %v592, 16
      %v1958 = vpop.permute.xlu0 %1957
      %1960 = vrot.lane.b32.xlu0 %v592, 32
      %v1961 = vpop.permute.xlu0 %1960
      %1963 = vrot.lane.b32.xlu0 %v592, 48
      %v1964 = vpop.permute.xlu0 %1963
      %v1966 = vsel %vm1070, %v592, %v1958
      %v1967 = vsel %vm1074, %v1966, %v1961
      %v1968 = vsel %vm1078, %v1967, %v1964
      %v1969 = vsel %vm1082, %v1968, 0.0
      %v1970 = vlaneseq
      %v1971 = vshrl.u32 %v1970, 7
      %v1972 = vsub.s32 0, %v1971
      %v1973 = vrot.slane %v1969, %v1972
      %v1974 = vadd.f32 %v1950, %v1973
      %v1975 = vmax.f32 %v1974, 0.0
      %v1976 = vmul.f32 %v1975, %v1955
      %v1977 = vsel %vm1320, %v1976, 0.0
      %1978 = vadd.xlane.f32.xlu0 %v1977
      %v1979 = vpop.xlane.xlu0 %1978
      %v1980 = vsel %vm1320, %v1979, 0.0
      %v1981 = vrot.slane %v1980, 4
      %v1982 = vadd.f32 %v1980, %v1981
      %v1983 = vrot.slane %v1982, 2
      %v1984 = vadd.f32 %v1982, %v1983
      %v1985 = vrot.slane %v1984, 1
      %v1986 = vadd.f32 %v1984, %v1985
      %v1987 = vlaneseq
      %v1988 = vshrl.u32 %v1987, 7
      %v1989 = vsub.s32 1, %v1988
      %v1990 = vrot.slane %v1969, %v1989
      %v1991 = vadd.f32 %v1950, %v1990
      %v1992 = vmax.f32 %v1991, 0.0
      %v1994 = vrot.slane %v1955, 4
      %v1996 = vmul.f32 %v1992, %v1994
      %vm1997 = vcmask 1047556
      %v1998 = vsel %vm1997, %v1996, 0.0
      %1999 = vadd.xlane.f32.xlu0 %v1998
      %v2000 = vpop.xlane.xlu0 %1999
      %v2002 = vrot.slane %v2000, 4
      %v2004 = vsel %vm1320, %v2002, 0.0
      %v2005 = vrot.slane %v2004, 4
      %v2006 = vadd.f32 %v2004, %v2005
      %v2007 = vrot.slane %v2006, 2
      %v2008 = vadd.f32 %v2006, %v2007
      %v2009 = vrot.slane %v2008, 1
      %v2010 = vadd.f32 %v2008, %v2009
      %vm2011 = vcmask 7168
      %v2012 = vsel %vm2011, %v1986, %v2010
      %v2013 = vld [vmem:[#allocation3] sm:$0x1]
      %2015 = vset.pattern.permute.xlu0 0
      %2016 = vperm.xlu0 %2015, %v2013
      %v2017 = vpop.permute.xlu0 %2016
      %v2019 = vlaneseq
      %v2020 = vshrl.u32 %v2019, 7
      %v2021 = vsub.s32 0, %v2020
      %v2022 = vrot.slane %v2017, %v2021
      %v2023 = vadd.f32 %v2012, %v2022
      %v2024 = vxor.u32 %v2023, 2147483648
      %v2025 = vmul.f32 %v2024, 1.442695
      %v2026 = vpow.pop %v2025
      %v2027 = vadd.f32 %v2026, 1.0
      %v2028 = vrcp.pop %v2027
      %v2029 = vmul.f32 1.0, %v2028
      %vm2030 = vcmask 8192
      %2031 = vst.msk [vmem:[%s376] sm:$0x1] %vm2030, %v2029
      %p2032 = scmp.lt.s32.totalorder %s23, 1
      %s2033 = scalar_select %p2032, %s23, 1
      %s2034 = scalar_lea.vmem %s10, %s2033
      // Predicated region
      $region61: #{forward.1} parent=59 // pred_check
        %p2035 = pneg %p261
      $region62: #{forward.1} parent=59 // pred_check_branch
        %2037 = sbr.rel (%p2035) target = $region64
      $region63: #{forward.1} parent=59 // pred_region
        _
      $region64: #{forward.1} parent=59 // pred_fallthru
        _
    $region60: #{forward.1} parent=5 // pred_fallthru
      _
    %p2038 = scmp.le.s32.totalorder 2, %s18
    // Predicated region
    $region65: #{forward.1} parent=5 // pred_check
      %p2039 = pneg %p2038
    $region66: #{forward.1} parent=5 // pred_check_branch
      %2041 = sbr.rel (%p2039) target = $region68
    $region67: #{forward.1} parent=5 // pred_region
      %s2042 = ssub.s32 %s18, 2
      // Predicated region
      $region69: #{forward.1} parent=67 // pred_check
        %p2043 = pneg %p267
      $region70: #{forward.1} parent=67 // pred_check_branch
        %2045 = sbr.rel (%p2043) target = $region72
      $region71: #{forward.1} parent=67 // pred_region
        %p2046 = scmp.lt.s32.totalorder %s24, 1
        %s2047 = scalar_select %p2046, %s24, 1
        %s2048 = scalar_lea.vmem %s10, %s2047
      $region72: #{forward.1} parent=67 // pred_fallthru
        _
    $region68: #{forward.1} parent=5 // pred_fallthru
      _
  $region6: #{forward.1} parent=0 // loop_footer
    %s22 = sadd.s32 1, %s18
  $region7: #{forward.1} parent=0 // loop_footer_branch
    %17 = sbr.rel target = $region3
  $region8: #{forward.1} parent=0 // loop_exit
    _

</llo_original>
